<compile_context>
chip_gen: v7x
topology: tpu7x:2x2x1
jax: 0.10.0
libtpu: 0.0.40
codegen_flags: <defaults>
</compile_context>

<pallas_src>
import functools
import numpy as np
import jax
import jax.numpy as jnp
from jax.experimental import pallas as pl
from jax.experimental.pallas import tpu as pltpu

NUM_NODES = 17
DIM_IN = 32
DIM_OUT = 32
BN_EPS = 1e-5
MAX_TILE = 1024   # max (b,t) slabs per grid step (~8 MB/step VMEM incl. double buffers)
TILE_ALIGN = 16   # bf16 sublane packing -> keep row tiles multiples of 16


def build_part_hypergraph_G(num_nodes=NUM_NODES):
    """Replicates HyperGCN._init_part_adj for dataset='h36m'."""
    H = np.zeros((num_nodes, 10))
    H[0][0], H[7][0], H[8][0] = 1, 1, 1
    H[8][1], H[9][1], H[10][1] = 1, 1, 1
    H[0][2], H[1][2], H[2][2] = 1, 1, 1
    H[2][3], H[3][3] = 1, 1
    H[0][4], H[4][4], H[5][4] = 1, 1, 1
    H[5][5], H[6][5] = 1, 1
    H[8][6], H[14][6], H[15][6] = 1, 1, 1
    H[8][7], H[11][7], H[12][7] = 1, 1, 1
    H[15][8], H[16][8] = 1, 1
    H[12][9], H[13][9] = 1, 1
    W = np.ones(H.shape[1])
    DV = np.sum(H * W, axis=1)
    DE = np.sum(H, axis=0)
    invDE = np.diag(np.power(DE, -1.0))
    DV2 = np.diag(np.power(DV, -0.5))
    Wd = np.diag(W)
    G = DV2 @ H @ Wd @ invDE @ H.T @ DV2
    return G.astype(np.float32)


def norm_adj(G):
    """HyperGCN.norm: column-normalize G @ diag(1/(colsum + 1e-3)). (tiny; XLA glue)"""
    d = jnp.sum(G, axis=0)
    return G * (1.0 / (d + 0.001))[None, :]


def _pick_tile(bt, max_tile=MAX_TILE, align=TILE_ALIGN):
    """16-row-aligned tile; capped at ceil(bt/2) so the grid has >= 2 steps whenever
    possible (v7x megacore), and at MAX_TILE for VMEM / DMA efficiency."""
    half = -(-bt // 2)                       # ceil(bt / 2)
    tile = -(-half // align) * align         # round up to sublane alignment
    return max(align, min(max_tile, tile))


# ------------------------------- kernels ---------------------------------------

def _stats_kernel(x_ref, w_ref, b_ref, s_ref, ss_ref, *, valid_rows, tile_rows, padded):
    # x_ref: (TB, V*C) bf16 tile.  w_ref: (V*C, V*D) bf16 fused weight (graph mix + conv + U),
    # constant index_map -> DMA'd once, VMEM-resident.  b_ref: (1, V*D) f32 fused bias.
    # Outputs: per-tile partial sum / sum-of-squares of z = x@W + b for the fused BN stats
    # (f32 accumulator; padded rows masked out).
    z = jnp.dot(x_ref[...], w_ref[...], preferred_element_type=jnp.float32) + b_ref[...]
    if padded:
        row = jax.lax.broadcasted_iota(jnp.int32, (tile_rows, 1), 0) \
              + pl.program_id(0) * tile_rows
        mask = (row < valid_rows).astype(jnp.float32)
        zm = z * mask
    else:
        zm = z
    s_ref[0] = jnp.sum(zm, axis=0, keepdims=True)
    ss_ref[0] = jnp.sum(z * zm, axis=0, keepdims=True)


def _bn_relu_kernel(x_ref, w_ref, scale_ref, shift_ref, o_ref, *, residual):
    # Recompute z = x @ W (bf16 MXU, f32 acc) from the resident weight instead of
    # re-reading a stored z from HBM, then apply the pre-folded per-node BN affine
    # (bias already folded into shift), optional residual, and ReLU.
    x = x_ref[...]
    z = jnp.dot(x, w_ref[...], preferred_element_type=jnp.float32)
    o = z * scale_ref[...] + shift_ref[...]
    if residual:
        o = o + x.astype(jnp.float32)
    o_ref[...] = jnp.maximum(o, 0.0)


# ------------------------------- wrapper ---------------------------------------

def hyper_gcn_forward(x, params):
    B, T, V, C = x.shape
    D = params["U_w"].shape[0]
    BT = B * T
    VC, VD = V * C, V * D

    # Fold graph mix + conv_part + U into one (VC, VD) weight + (VD,) bias (tiny XLA glue).
    #   W[(u,c),(v,d)] = Gn[u,v]*Wc[d,c] + delta(u,v)*Wu[d,c]
    G_norm = norm_adj(params["p_adj"])                       # (V, V)
    wc = params["conv_w"].reshape(D, C)
    wu = params["U_w"].reshape(D, C)
    w_big = (jnp.einsum("uv,dc->ucvd", G_norm, wc)
             + jnp.einsum("uv,dc->ucvd", jnp.eye(V, dtype=jnp.float32), wu)
             ).reshape(VC, VD)
    b_big = jnp.tile(params["conv_b"] + params["U_b"], V).reshape(1, VD)   # f32
    w_bf16 = w_big.astype(jnp.bfloat16)                                    # MXU input

    # Pad BT to a multiple of a 16-aligned tile; >= 2 tiles whenever possible.
    tb = _pick_tile(BT)
    bt_pad = -(-BT // tb) * tb
    n_tiles = bt_pad // tb
    padded = bt_pad != BT

    x2 = x.reshape(BT, VC).astype(jnp.bfloat16)              # channels-last, bf16 MXU input
    if padded:
        x2 = jnp.pad(x2, ((0, bt_pad - BT), (0, 0)))         # zero rows -> z = bias (masked)

    # Kernel 1: fused graph-agg + conv + U matmul per BT tile, emitting only the tiny
    # per-tile BN statistic partials (no z intermediate stored to HBM).
    stats_kern = functools.partial(_stats_kernel, valid_rows=BT, tile_rows=tb, padded=padded)
    psum, psumsq = pl.pallas_call(
        stats_kern,
        out_shape=(jax.ShapeDtypeStruct((n_tiles, 1, VD), jnp.float32),
                   jax.ShapeDtypeStruct((n_tiles, 1, VD), jnp.float32)),
        grid=(n_tiles,),
        in_specs=[
            pl.BlockSpec((tb, VC), lambda i: (i, 0)),
            pl.BlockSpec((VC, VD), lambda i: (0, 0)),   # constant -> resident, no re-DMA
            pl.BlockSpec((1, VD), lambda i: (0, 0)),
        ],
        out_specs=(
            pl.BlockSpec((1, 1, VD), lambda i: (i, 0, 0)),
            pl.BlockSpec((1, 1, VD), lambda i: (i, 0, 0)),
        ),
        compiler_params=pltpu.CompilerParams(dimension_semantics=("parallel",)),
    )(x2, w_bf16, b_big)

    # BN batch statistics (biased variance, matching torch BN normalization) from the
    # per-tile f32 partials: tiny (n_tiles, V*D) reductions, pure XLA glue.
    # TODO(synk): E[z^2]-E[z]^2 in f32 can cancel for very large BT; use centered per-tile
    # partials if BT grows by orders of magnitude.
    count = BT * D
    node_sum = psum.sum(axis=(0, 1)).reshape(V, D).sum(axis=1)
    node_sumsq = psumsq.sum(axis=(0, 1)).reshape(V, D).sum(axis=1)
    mean = node_sum / count
    var = jnp.maximum(node_sumsq / count - mean * mean, 0.0)
    invstd = jax.lax.rsqrt(var + BN_EPS)
    scale_node = params["bn_gamma"] * invstd
    shift_node = params["bn_beta"] - mean * scale_node
    scale_vec = jnp.repeat(scale_node, D)                       # (VD,)
    shift_vec = jnp.repeat(shift_node, D) + b_big.reshape(VD) * scale_vec  # bias folded in
    scale = scale_vec.reshape(1, VD)
    shift = shift_vec.reshape(1, VD)

    # Kernel 2: recompute z from x (resident bf16 weight), normalize, residual, ReLU.
    residual = (C == D)
    kern2 = functools.partial(_bn_relu_kernel, residual=residual)
    out2 = pl.pallas_call(
        kern2,
        out_shape=jax.ShapeDtypeStruct((bt_pad, VD), jnp.float32),
        grid=(n_tiles,),
        in_specs=[
            pl.BlockSpec((tb, VC), lambda i: (i, 0)),
            pl.BlockSpec((VC, VD), lambda i: (0, 0)),
            pl.BlockSpec((1, VD), lambda i: (0, 0)),
            pl.BlockSpec((1, VD), lambda i: (0, 0)),
        ],
        out_specs=pl.BlockSpec((tb, VD), lambda i: (i, 0)),
        compiler_params=pltpu.CompilerParams(dimension_semantics=("parallel",)),
    )(x2, w_bf16, scale, shift)

    return out2[:BT].reshape(B, T, V, D)


# ------------------------------- reference -------------------------------------

def hyper_gcn_reference(x, params):
    B, T, V, C = x.shape
    D = params["U_w"].shape[0]
    x_flat = x.reshape(B * T, V, C)
    G_norm = norm_adj(params["p_adj"])
    y = jnp.einsum("uv,nuc->nvc", G_norm, x_flat)
    agg = y @ params["conv_w"].T + params["conv_b"]
    ux = x_flat @ params["U_w"].T + params["U_b"]
    z = agg + ux
    mean = jnp.mean(z, axis=(0, 2), keepdims=True)
    var = jnp.mean((z - mean) ** 2, axis=(0, 2), keepdims=True)
    bn = (z - mean) / jnp.sqrt(var + BN_EPS)
    bn = bn * params["bn_gamma"].reshape(1, V, 1) + params["bn_beta"].reshape(1, V, 1)
    out = jax.nn.relu((x_flat + bn) if C == D else bn)
    return out.reshape(B, T, V, D)


if __name__ == "__main__":
    B, T, V = 2, 8, NUM_NODES
    key = jax.random.PRNGKey(0)
    k = jax.random.split(key, 6)

    x = jax.random.normal(k[0], (B, T, V, DIM_IN), dtype=jnp.float32)

    # Deterministic parameter init matching the module's shapes.
    # Note: self.V linear is unused in the spatial + use_partscale branch, so omitted.
    # TODO(synk): BatchNorm running-stats update is a training-time side effect with no
    # effect on the returned tensor; it is not materialized here.
    params = {
        "U_w": jax.random.normal(k[1], (DIM_OUT, DIM_IN), jnp.float32) * np.sqrt(2.0 / DIM_IN),
        "U_b": jax.random.uniform(k[2], (DIM_OUT,), jnp.float32, -1.0, 1.0) / np.sqrt(DIM_IN),
        "conv_w": jax.random.normal(k[3], (DIM_OUT, DIM_IN), jnp.float32) * np.sqrt(2.0 / DIM_IN),
        "conv_b": jax.random.uniform(k[4], (DIM_OUT,), jnp.float32, -1.0, 1.0) / np.sqrt(DIM_IN),
        "bn_gamma": jnp.ones((NUM_NODES,), jnp.float32),
        "bn_beta": jnp.zeros((NUM_NODES,), jnp.float32),
        "p_adj": jnp.asarray(build_part_hypergraph_G()),
    }

    out = jax.block_until_ready(hyper_gcn_forward(x, params))
    ref = hyper_gcn_reference(x, params)
    assert out.shape == (B, T, V, DIM_OUT), out.shape
    # bf16 MXU inputs vs f32 reference -> bf16-appropriate tolerance.
    np.testing.assert_allclose(np.asarray(out), np.asarray(ref), rtol=5e-2, atol=5e-2)
    print("KERNEL_OK")
</pallas_src>

<mosaic_0001>
module attributes {stable_mosaic.version = 11 : i64} {
  func.func @_stats_kernel(%arg0: i32, %arg1: memref<16x544xbf16, #tpu.memory_space<vmem>>, %arg2: memref<544x544xbf16, #tpu.memory_space<vmem>>, %arg3: memref<1x544xf32, #tpu.memory_space<vmem>>, %arg4: memref<1x1x544xf32, #tpu.memory_space<vmem>>, %arg5: memref<1x1x544xf32, #tpu.memory_space<vmem>>) attributes {dimension_semantics = [#tpu.dimension_semantics<parallel>], iteration_bounds = array<i64: 1>, scalar_prefetch = 0 : i64, scratch_operands = 0 : i64, tpu.core_type = #tpu.core_type<tc>, window_params = [{transform_indices = @transform_0, window_bounds = array<i64: 16, 544>}, {pipeline_mode = #tpu.pipeline_mode<synchronous>, transform_indices = @transform_1, window_bounds = array<i64: 544, 544>}, {pipeline_mode = #tpu.pipeline_mode<synchronous>, transform_indices = @transform_2, window_bounds = array<i64: 1, 544>}, {transform_indices = @transform_3, window_bounds = array<i64: 1, 1, 544>}, {transform_indices = @transform_4, window_bounds = array<i64: 1, 1, 544>}]} {
    %c0 = arith.constant 0 : index
    %c0_0 = arith.constant 0 : index
    %0 = vector.load %arg1[%c0, %c0_0] : memref<16x544xbf16, #tpu.memory_space<vmem>>, vector<16x544xbf16>
    %c0_1 = arith.constant 0 : index
    %c0_2 = arith.constant 0 : index
    %1 = vector.load %arg2[%c0_1, %c0_2] : memref<544x544xbf16, #tpu.memory_space<vmem>>, vector<544x544xbf16>
    %cst = arith.constant dense<0.000000e+00> : vector<16x544xf32>
    %2 = tpu.matmul %0, %1, %cst {dimension_numbers = #tpu.dot_dimension_numbers<[1], [0], [0], [1], [0, 0, 1, 1], [], []>} : vector<16x544xbf16>, vector<544x544xbf16>, vector<16x544xf32> -> vector<16x544xf32>
    %c0_3 = arith.constant 0 : index
    %c0_4 = arith.constant 0 : index
    %3 = vector.load %arg3[%c0_3, %c0_4] : memref<1x544xf32, #tpu.memory_space<vmem>>, vector<1x544xf32>
    %4 = vector.broadcast %3 : vector<1x544xf32> to vector<16x544xf32>
    %5 = arith.addf %2, %4 : vector<16x544xf32>
    %cst_5 = arith.constant dense<0.000000e+00> : vector<544xf32>
    %6 = vector.multi_reduction <add>, %5, %cst_5 [0] : vector<16x544xf32> to vector<544xf32>
    %7 = vector.shape_cast %6 : vector<544xf32> to vector<1x544xf32>
    %c0_6 = arith.constant 0 : index
    %c0_7 = arith.constant 0 : index
    %c0_8 = arith.constant 0 : index
    %8 = vector.load %arg4[%c0_6, %c0_7, %c0_8] : memref<1x1x544xf32, #tpu.memory_space<vmem>>, vector<1x1x544xf32>
    %9 = vector.shape_cast %8 : vector<1x1x544xf32> to vector<1x544xf32>
    %10 = vector.shape_cast %7 : vector<1x544xf32> to vector<1x1x544xf32>
    tpu.vector_store %arg4[%c0_6, %c0_7, %c0_8], %10 {strides = array<i32>} : memref<1x1x544xf32, #tpu.memory_space<vmem>>, vector<1x1x544xf32>,
    %11 = arith.mulf %5, %5 : vector<16x544xf32>
    %cst_9 = arith.constant dense<0.000000e+00> : vector<544xf32>
    %12 = vector.multi_reduction <add>, %11, %cst_9 [0] : vector<16x544xf32> to vector<544xf32>
    %13 = vector.shape_cast %12 : vector<544xf32> to vector<1x544xf32>
    %c0_10 = arith.constant 0 : index
    %c0_11 = arith.constant 0 : index
    %c0_12 = arith.constant 0 : index
    %14 = vector.load %arg5[%c0_10, %c0_11, %c0_12] : memref<1x1x544xf32, #tpu.memory_space<vmem>>, vector<1x1x544xf32>
    %15 = vector.shape_cast %14 : vector<1x1x544xf32> to vector<1x544xf32>
    %16 = vector.shape_cast %13 : vector<1x544xf32> to vector<1x1x544xf32>
    tpu.vector_store %arg5[%c0_10, %c0_11, %c0_12], %16 {strides = array<i32>} : memref<1x1x544xf32, #tpu.memory_space<vmem>>, vector<1x1x544xf32>,
    return
  }
  func.func @transform_0(%arg0: i32) -> (i32, i32) {
    %c0_i32 = arith.constant 0 : i32
    %c0_i32_0 = arith.constant 0 : i32
    return %arg0, %c0_i32 : i32, i32
  }
  func.func @transform_1(%arg0: i32) -> (i32, i32) {
    %c0_i32 = arith.constant 0 : i32
    %c0_i32_0 = arith.constant 0 : i32
    %c0_i32_1 = arith.constant 0 : i32
    return %c0_i32, %c0_i32_0 : i32, i32
  }
  func.func @transform_2(%arg0: i32) -> (i32, i32) {
    %c0_i32 = arith.constant 0 : i32
    %c0_i32_0 = arith.constant 0 : i32
    %c0_i32_1 = arith.constant 0 : i32
    return %c0_i32, %c0_i32_0 : i32, i32
  }
  func.func @transform_3(%arg0: i32) -> (i32, i32, i32) {
    %c0_i32 = arith.constant 0 : i32
    %c0_i32_0 = arith.constant 0 : i32
    %c0_i32_1 = arith.constant 0 : i32
    return %arg0, %c0_i32, %c0_i32_0 : i32, i32, i32
  }
  func.func @transform_4(%arg0: i32) -> (i32, i32, i32) {
    %c0_i32 = arith.constant 0 : i32
    %c0_i32_0 = arith.constant 0 : i32
    %c0_i32_1 = arith.constant 0 : i32
    return %arg0, %c0_i32, %c0_i32_0 : i32, i32, i32
  }
}

</mosaic_0001>

<llo_original>
// kernel: tpu_custom_call.1
$region0: #{tpu_custom_call.1}
  #allocation0 [shape = 'u32[]', space=smem, size = 0x4, offset = 0x4, fixed_abs, tag = 'smem constant byte address 0x4 - core index']
  #allocation1 [shape = 'u32[144,128]{1,0:T(1,128)}', space=vmem, size = 0x12000, scoped, tag = 'internal scratch']
  %s0 = inlined_call_operand.hbm [shape: bf16[16,544], index: 0, kind: input, shape index: {}]
  %s1 = inlined_call_operand.hbm [shape: bf16[544,544], index: 1, kind: input, shape index: {}]
  %s2 = inlined_call_operand.vmem [shape: f32[1,544], index: 2, kind: input, shape index: {}]
  %s3 = inlined_call_operand.hbm [shape: f32[1,1,544], index: 3, kind: output, shape index: {0}]
  %s4 = inlined_call_operand.hbm [shape: f32[1,1,544], index: 4, kind: output, shape index: {1}]
  %5 = xla_tuple %s3, %s4
  %s6 = sld [smem:[#allocation0]]
  $region38: #{tpu_custom_call.1} parent=0
    _
  %s8 = ssub.s32 1, %s6
  %s9 = scalar_select 0, %s8, %s6
  $region1: #{tpu_custom_call.1} parent=0
    #allocation2 [shape = 'u8[20480]{0}', space=vmem, size = 0x5000, scoped, tag = 'input window, operand 0, single buffered']
    #allocation3 [shape = 's32[1]{0}', space=sflag, size = 0x4, scoped, tag = 'scoped memory for tpu_custom_call.1']
    #allocation4 [shape = 's32[1]{0}', space=sflag, size = 0x4, scoped, tag = 'scoped memory for tpu_custom_call.1']
    #allocation5 [shape = 'u8[696320]{0}', space=vmem, size = 0xaa000, scoped, tag = 'input window, operand 1, single buffered']
    #allocation6 [shape = 's32[1]{0}', space=sflag, size = 0x4, scoped, tag = 'scoped memory for tpu_custom_call.1']
    #allocation7 [shape = 'u8[2560]{0}', space=vmem, size = 0xc00, scoped, tag = 'output window, operand 0, single buffered']
    #allocation8 [shape = 'u8[2560]{0}', space=vmem, size = 0xc00, scoped, tag = 'output window, operand 1, single buffered']
    #allocation9 [shape = 's32[1]{0}', space=sflag, size = 0x4, scoped, tag = 'scoped memory for tpu_custom_call.1']
    %10 = vsyncpa [#allocation3], 0
    %11 = vsyncpa [#allocation6], 0
    %12 = vsyncpa [#allocation4], 0
    %13 = vsyncpa [#allocation9], 0
    // Predicated region
    $region2: #{tpu_custom_call.1} parent=1 // pred_check
      _
    $region3: #{tpu_custom_call.1} parent=1 // pred_check_branch
      %15 = sbr.rel (0) target = $region5
    $region4: #{tpu_custom_call.1} parent=1 // pred_region
      %s17 = ssub.s32 640, 640
      %18 = vsyncadd [#allocation3], %s17
      %s19 = sshll.u32 [#allocation2], 4
      %s20 = int_to_ptr.vmem [resolvable:$true] %s19
      %25 = dma.hbm_to_vmem [thread:$0]  %s0, 640, %s20, [#allocation3], 320, 320, 20
    $region5: #{tpu_custom_call.1} parent=1 // pred_fallthru
      _
    // Predicated region
    $region6: #{tpu_custom_call.1} parent=1 // pred_check
      _
    $region7: #{tpu_custom_call.1} parent=1 // pred_check_branch
      %27 = sbr.rel (0) target = $region9
    $region8: #{tpu_custom_call.1} parent=1 // pred_region
      %s29 = ssub.s32 21760, 21760
      %30 = vsyncadd [#allocation6], %s29
      %s31 = sshll.u32 [#allocation5], 4
      %s32 = int_to_ptr.vmem [resolvable:$true] %s31
      %37 = dma.hbm_to_vmem [thread:$0]  %s1, 21760, %s32, [#allocation6], 320, 320, 20
    $region9: #{tpu_custom_call.1} parent=1 // pred_fallthru
      _
    // Predicated region
    $region10: #{tpu_custom_call.1} parent=1 // pred_check
      _
    $region11: #{tpu_custom_call.1} parent=1 // pred_check_branch
      %39 = sbr.rel (0) target = $region13
    $region12: #{tpu_custom_call.1} parent=1 // pred_region
      _
    $region13: #{tpu_custom_call.1} parent=1 // pred_fallthru
      _
    // Predicated region
    $region14: #{tpu_custom_call.1} parent=1 // pred_check
      _
    $region15: #{tpu_custom_call.1} parent=1 // pred_check_branch
      %41 = sbr.rel (0) target = $region17
    $region16: #{tpu_custom_call.1} parent=1 // pred_region
      %42 = dma.done [#allocation3], 640
    $region17: #{tpu_custom_call.1} parent=1 // pred_fallthru
      _
    // Predicated region
    $region18: #{tpu_custom_call.1} parent=1 // pred_check
      _
    $region19: #{tpu_custom_call.1} parent=1 // pred_check_branch
      %44 = sbr.rel (0) target = $region21
    $region20: #{tpu_custom_call.1} parent=1 // pred_region
      %45 = dma.done [#allocation6], 21760
    $region21: #{tpu_custom_call.1} parent=1 // pred_fallthru
      _
    %v47 = vld [vmem:[#allocation2] sm:$0xff]
    %v48 = vld [vmem:[#allocation2 + $0x8] sm:$0xff]
    %v49 = vld [vmem:[#allocation2 + $0x10] sm:$0xf]
    %v50 = vld [vmem:[#allocation2 + $0x14] sm:$0xff]
    %v51 = vld [vmem:[#allocation2 + $0x1c] sm:$0xff]
    %v52 = vld [vmem:[#allocation2 + $0x24] sm:$0xf]
    %v53 = vld [vmem:[#allocation5] sm:$0xff]
    %v54 = vld [vmem:[#allocation5 + $0x8] sm:$0xff]
    %v55 = vld [vmem:[#allocation5 + $0x10] sm:$0xf]
    %v56 = vld [vmem:[#allocation5 + $0x14] sm:$0xff]
    %v57 = vld [vmem:[#allocation5 + $0x1c] sm:$0xff]
    %v58 = vld [vmem:[#allocation5 + $0x24] sm:$0xf]
    %v59 = vld [vmem:[#allocation5 + $0x28] sm:$0xff]
    %v60 = vld [vmem:[#allocation5 + $0x30] sm:$0xff]
    %v61 = vld [vmem:[#allocation5 + $0x38] sm:$0xf]
    %v62 = vld [vmem:[#allocation5 + $0x3c] sm:$0xff]
    %v63 = vld [vmem:[#allocation5 + $0x44] sm:$0xff]
    %v64 = vld [vmem:[#allocation5 + $0x4c] sm:$0xf]
    %v65 = vld [vmem:[#allocation5 + $0x50] sm:$0xff]
    %v66 = vld [vmem:[#allocation5 + $0x58] sm:$0xff]
    %v67 = vld [vmem:[#allocation5 + $0x60] sm:$0xf]
    %v68 = vld [vmem:[#allocation5 + $0x64] sm:$0xff]
    %v69 = vld [vmem:[#allocation5 + $0x6c] sm:$0xff]
    %v70 = vld [vmem:[#allocation5 + $0x74] sm:$0xf]
    %v71 = vld [vmem:[#allocation5 + $0x78] sm:$0xff]
    %v72 = vld [vmem:[#allocation5 + $0x80] sm:$0xff]
    %v73 = vld [vmem:[#allocation5 + $0x88] sm:$0xf]
    %v74 = vld [vmem:[#allocation5 + $0x8c] sm:$0xff]
    %v75 = vld [vmem:[#allocation5 + $0x94] sm:$0xff]
    %v76 = vld [vmem:[#allocation5 + $0x9c] sm:$0xf]
    %v77 = vld [vmem:[#allocation5 + $0xa0] sm:$0xff]
    %v78 = vld [vmem:[#allocation5 + $0xa8] sm:$0xff]
    %v79 = vld [vmem:[#allocation5 + $0xb0] sm:$0xf]
    %v80 = vld [vmem:[#allocation5 + $0xb4] sm:$0xff]
    %v81 = vld [vmem:[#allocation5 + $0xbc] sm:$0xff]
    %v82 = vld [vmem:[#allocation5 + $0xc4] sm:$0xf]
    %v83 = vld [vmem:[#allocation5 + $0xc8] sm:$0xff]
    %v84 = vld [vmem:[#allocation5 + $0xd0] sm:$0xff]
    %v85 = vld [vmem:[#allocation5 + $0xd8] sm:$0xf]
    %v86 = vld [vmem:[#allocation5 + $0xdc] sm:$0xff]
    %v87 = vld [vmem:[#allocation5 + $0xe4] sm:$0xff]
    %v88 = vld [vmem:[#allocation5 + $0xec] sm:$0xf]
    %v89 = vld [vmem:[#allocation5 + $0xf0] sm:$0xff]
    %v90 = vld [vmem:[#allocation5 + $0xf8] sm:$0xff]
    %v91 = vld [vmem:[#allocation5 + $0x100] sm:$0xf]
    %v92 = vld [vmem:[#allocation5 + $0x104] sm:$0xff]
    %v93 = vld [vmem:[#allocation5 + $0x10c] sm:$0xff]
    %v94 = vld [vmem:[#allocation5 + $0x114] sm:$0xf]
    %v95 = vld [vmem:[#allocation5 + $0x118] sm:$0xff]
    %v96 = vld [vmem:[#allocation5 + $0x120] sm:$0xff]
    %v97 = vld [vmem:[#allocation5 + $0x128] sm:$0xf]
    %v98 = vld [vmem:[#allocation5 + $0x12c] sm:$0xff]
    %v99 = vld [vmem:[#allocation5 + $0x134] sm:$0xff]
    %v100 = vld [vmem:[#allocation5 + $0x13c] sm:$0xf]
    %v101 = vld [vmem:[#allocation5 + $0x140] sm:$0xff]
    %v102 = vld [vmem:[#allocation5 + $0x148] sm:$0xff]
    %v103 = vld [vmem:[#allocation5 + $0x150] sm:$0xf]
    %v104 = vld [vmem:[#allocation5 + $0x154] sm:$0xff]
    %v105 = vld [vmem:[#allocation5 + $0x15c] sm:$0xff]
    %v106 = vld [vmem:[#allocation5 + $0x164] sm:$0xf]
    %v107 = vld [vmem:[#allocation5 + $0x168] sm:$0xff]
    %v108 = vld [vmem:[#allocation5 + $0x170] sm:$0xff]
    %v109 = vld [vmem:[#allocation5 + $0x178] sm:$0xf]
    %v110 = vld [vmem:[#allocation5 + $0x17c] sm:$0xff]
    %v111 = vld [vmem:[#allocation5 + $0x184] sm:$0xff]
    %v112 = vld [vmem:[#allocation5 + $0x18c] sm:$0xf]
    %v113 = vld [vmem:[#allocation5 + $0x190] sm:$0xff]
    %v114 = vld [vmem:[#allocation5 + $0x198] sm:$0xff]
    %v115 = vld [vmem:[#allocation5 + $0x1a0] sm:$0xf]
    %v116 = vld [vmem:[#allocation5 + $0x1a4] sm:$0xff]
    %v117 = vld [vmem:[#allocation5 + $0x1ac] sm:$0xff]
    %v118 = vld [vmem:[#allocation5 + $0x1b4] sm:$0xf]
    %v119 = vld [vmem:[#allocation5 + $0x1b8] sm:$0xff]
    %v120 = vld [vmem:[#allocation5 + $0x1c0] sm:$0xff]
    %v121 = vld [vmem:[#allocation5 + $0x1c8] sm:$0xf]
    %v122 = vld [vmem:[#allocation5 + $0x1cc] sm:$0xff]
    %v123 = vld [vmem:[#allocation5 + $0x1d4] sm:$0xff]
    %v124 = vld [vmem:[#allocation5 + $0x1dc] sm:$0xf]
    %v125 = vld [vmem:[#allocation5 + $0x1e0] sm:$0xff]
    %v126 = vld [vmem:[#allocation5 + $0x1e8] sm:$0xff]
    %v127 = vld [vmem:[#allocation5 + $0x1f0] sm:$0xf]
    %v128 = vld [vmem:[#allocation5 + $0x1f4] sm:$0xff]
    %v129 = vld [vmem:[#allocation5 + $0x1fc] sm:$0xff]
    %v130 = vld [vmem:[#allocation5 + $0x204] sm:$0xf]
    %v131 = vld [vmem:[#allocation5 + $0x208] sm:$0xff]
    %v132 = vld [vmem:[#allocation5 + $0x210] sm:$0xff]
    %v133 = vld [vmem:[#allocation5 + $0x218] sm:$0xf]
    %v134 = vld [vmem:[#allocation5 + $0x21c] sm:$0xff]
    %v135 = vld [vmem:[#allocation5 + $0x224] sm:$0xff]
    %v136 = vld [vmem:[#allocation5 + $0x22c] sm:$0xf]
    %v137 = vld [vmem:[#allocation5 + $0x230] sm:$0xff]
    %v138 = vld [vmem:[#allocation5 + $0x238] sm:$0xff]
    %v139 = vld [vmem:[#allocation5 + $0x240] sm:$0xf]
    %v140 = vld [vmem:[#allocation5 + $0x244] sm:$0xff]
    %v141 = vld [vmem:[#allocation5 + $0x24c] sm:$0xff]
    %v142 = vld [vmem:[#allocation5 + $0x254] sm:$0xf]
    %v143 = vld [vmem:[#allocation5 + $0x258] sm:$0xff]
    %v144 = vld [vmem:[#allocation5 + $0x260] sm:$0xff]
    %v145 = vld [vmem:[#allocation5 + $0x268] sm:$0xf]
    %v146 = vld [vmem:[#allocation5 + $0x26c] sm:$0xff]
    %v147 = vld [vmem:[#allocation5 + $0x274] sm:$0xff]
    %v148 = vld [vmem:[#allocation5 + $0x27c] sm:$0xf]
    %v149 = vld [vmem:[#allocation5 + $0x280] sm:$0xff]
    %v150 = vld [vmem:[#allocation5 + $0x288] sm:$0xff]
    %v151 = vld [vmem:[#allocation5 + $0x290] sm:$0xf]
    %v152 = vld [vmem:[#allocation5 + $0x294] sm:$0xff]
    %v153 = vld [vmem:[#allocation5 + $0x29c] sm:$0xff]
    %v154 = vld [vmem:[#allocation5 + $0x2a4] sm:$0xf]
    %v155 = vld [vmem:[#allocation5 + $0x2a8] sm:$0xff]
    %v156 = vld [vmem:[#allocation5 + $0x2b0] sm:$0xff]
    %v157 = vld [vmem:[#allocation5 + $0x2b8] sm:$0xf]
    %v158 = vld [vmem:[#allocation5 + $0x2bc] sm:$0xff]
    %v159 = vld [vmem:[#allocation5 + $0x2c4] sm:$0xff]
    %v160 = vld [vmem:[#allocation5 + $0x2cc] sm:$0xf]
    %v161 = vld [vmem:[#allocation5 + $0x2d0] sm:$0xff]
    %v162 = vld [vmem:[#allocation5 + $0x2d8] sm:$0xff]
    %v163 = vld [vmem:[#allocation5 + $0x2e0] sm:$0xf]
    %v164 = vld [vmem:[#allocation5 + $0x2e4] sm:$0xff]
    %v165 = vld [vmem:[#allocation5 + $0x2ec] sm:$0xff]
    %v166 = vld [vmem:[#allocation5 + $0x2f4] sm:$0xf]
    %v167 = vld [vmem:[#allocation5 + $0x2f8] sm:$0xff]
    %v168 = vld [vmem:[#allocation5 + $0x300] sm:$0xff]
    %v169 = vld [vmem:[#allocation5 + $0x308] sm:$0xf]
    %v170 = vld [vmem:[#allocation5 + $0x30c] sm:$0xff]
    %v171 = vld [vmem:[#allocation5 + $0x314] sm:$0xff]
    %v172 = vld [vmem:[#allocation5 + $0x31c] sm:$0xf]
    %v173 = vld [vmem:[#allocation5 + $0x320] sm:$0xff]
    %v174 = vld [vmem:[#allocation5 + $0x328] sm:$0xff]
    %v175 = vld [vmem:[#allocation5 + $0x330] sm:$0xf]
    %v176 = vld [vmem:[#allocation5 + $0x334] sm:$0xff]
    %v177 = vld [vmem:[#allocation5 + $0x33c] sm:$0xff]
    %v178 = vld [vmem:[#allocation5 + $0x344] sm:$0xf]
    %v179 = vld [vmem:[#allocation5 + $0x348] sm:$0xff]
    %v180 = vld [vmem:[#allocation5 + $0x350] sm:$0xff]
    %v181 = vld [vmem:[#allocation5 + $0x358] sm:$0xf]
    %v182 = vld [vmem:[#allocation5 + $0x35c] sm:$0xff]
    %v183 = vld [vmem:[#allocation5 + $0x364] sm:$0xff]
    %v184 = vld [vmem:[#allocation5 + $0x36c] sm:$0xf]
    %v185 = vld [vmem:[#allocation5 + $0x370] sm:$0xff]
    %v186 = vld [vmem:[#allocation5 + $0x378] sm:$0xff]
    %v187 = vld [vmem:[#allocation5 + $0x380] sm:$0xf]
    %v188 = vld [vmem:[#allocation5 + $0x384] sm:$0xff]
    %v189 = vld [vmem:[#allocation5 + $0x38c] sm:$0xff]
    %v190 = vld [vmem:[#allocation5 + $0x394] sm:$0xf]
    %v191 = vld [vmem:[#allocation5 + $0x398] sm:$0xff]
    %v192 = vld [vmem:[#allocation5 + $0x3a0] sm:$0xff]
    %v193 = vld [vmem:[#allocation5 + $0x3a8] sm:$0xf]
    %v194 = vld [vmem:[#allocation5 + $0x3ac] sm:$0xff]
    %v195 = vld [vmem:[#allocation5 + $0x3b4] sm:$0xff]
    %v196 = vld [vmem:[#allocation5 + $0x3bc] sm:$0xf]
    %v197 = vld [vmem:[#allocation5 + $0x3c0] sm:$0xff]
    %v198 = vld [vmem:[#allocation5 + $0x3c8] sm:$0xff]
    %v199 = vld [vmem:[#allocation5 + $0x3d0] sm:$0xf]
    %v200 = vld [vmem:[#allocation5 + $0x3d4] sm:$0xff]
    %v201 = vld [vmem:[#allocation5 + $0x3dc] sm:$0xff]
    %v202 = vld [vmem:[#allocation5 + $0x3e4] sm:$0xf]
    %v203 = vld [vmem:[#allocation5 + $0x3e8] sm:$0xff]
    %v204 = vld [vmem:[#allocation5 + $0x3f0] sm:$0xff]
    %v205 = vld [vmem:[#allocation5 + $0x3f8] sm:$0xf]
    %v206 = vld [vmem:[#allocation5 + $0x3fc] sm:$0xff]
    %v207 = vld [vmem:[#allocation5 + $0x404] sm:$0xff]
    %v208 = vld [vmem:[#allocation5 + $0x40c] sm:$0xf]
    %v209 = vld [vmem:[#allocation5 + $0x410] sm:$0xff]
    %v210 = vld [vmem:[#allocation5 + $0x418] sm:$0xff]
    %v211 = vld [vmem:[#allocation5 + $0x420] sm:$0xf]
    %v212 = vld [vmem:[#allocation5 + $0x424] sm:$0xff]
    %v213 = vld [vmem:[#allocation5 + $0x42c] sm:$0xff]
    %v214 = vld [vmem:[#allocation5 + $0x434] sm:$0xf]
    %v215 = vld [vmem:[#allocation5 + $0x438] sm:$0xff]
    %v216 = vld [vmem:[#allocation5 + $0x440] sm:$0xff]
    %v217 = vld [vmem:[#allocation5 + $0x448] sm:$0xf]
    %v218 = vld [vmem:[#allocation5 + $0x44c] sm:$0xff]
    %v219 = vld [vmem:[#allocation5 + $0x454] sm:$0xff]
    %v220 = vld [vmem:[#allocation5 + $0x45c] sm:$0xf]
    %v221 = vld [vmem:[#allocation5 + $0x460] sm:$0xff]
    %v222 = vld [vmem:[#allocation5 + $0x468] sm:$0xff]
    %v223 = vld [vmem:[#allocation5 + $0x470] sm:$0xf]
    %v224 = vld [vmem:[#allocation5 + $0x474] sm:$0xff]
    %v225 = vld [vmem:[#allocation5 + $0x47c] sm:$0xff]
    %v226 = vld [vmem:[#allocation5 + $0x484] sm:$0xf]
    %v227 = vld [vmem:[#allocation5 + $0x488] sm:$0xff]
    %v228 = vld [vmem:[#allocation5 + $0x490] sm:$0xff]
    %v229 = vld [vmem:[#allocation5 + $0x498] sm:$0xf]
    %v230 = vld [vmem:[#allocation5 + $0x49c] sm:$0xff]
    %v231 = vld [vmem:[#allocation5 + $0x4a4] sm:$0xff]
    %v232 = vld [vmem:[#allocation5 + $0x4ac] sm:$0xf]
    %v233 = vld [vmem:[#allocation5 + $0x4b0] sm:$0xff]
    %v234 = vld [vmem:[#allocation5 + $0x4b8] sm:$0xff]
    %v235 = vld [vmem:[#allocation5 + $0x4c0] sm:$0xf]
    %v236 = vld [vmem:[#allocation5 + $0x4c4] sm:$0xff]
    %v237 = vld [vmem:[#allocation5 + $0x4cc] sm:$0xff]
    %v238 = vld [vmem:[#allocation5 + $0x4d4] sm:$0xf]
    %v239 = vld [vmem:[#allocation5 + $0x4d8] sm:$0xff]
    %v240 = vld [vmem:[#allocation5 + $0x4e0] sm:$0xff]
    %v241 = vld [vmem:[#allocation5 + $0x4e8] sm:$0xf]
    %v242 = vld [vmem:[#allocation5 + $0x4ec] sm:$0xff]
    %v243 = vld [vmem:[#allocation5 + $0x4f4] sm:$0xff]
    %v244 = vld [vmem:[#allocation5 + $0x4fc] sm:$0xf]
    %v245 = vld [vmem:[#allocation5 + $0x500] sm:$0xff]
    %v246 = vld [vmem:[#allocation5 + $0x508] sm:$0xff]
    %v247 = vld [vmem:[#allocation5 + $0x510] sm:$0xf]
    %v248 = vld [vmem:[#allocation5 + $0x514] sm:$0xff]
    %v249 = vld [vmem:[#allocation5 + $0x51c] sm:$0xff]
    %v250 = vld [vmem:[#allocation5 + $0x524] sm:$0xf]
    %v251 = vld [vmem:[#allocation5 + $0x528] sm:$0xff]
    %v252 = vld [vmem:[#allocation5 + $0x530] sm:$0xff]
    %v253 = vld [vmem:[#allocation5 + $0x538] sm:$0xf]
    %v254 = vld [vmem:[#allocation5 + $0x53c] sm:$0xff]
    %v255 = vld [vmem:[#allocation5 + $0x544] sm:$0xff]
    %v256 = vld [vmem:[#allocation5 + $0x54c] sm:$0xf]
    %v257 = vld [vmem:[%s2] sm:$0x1f]
    %v259 = vlaneseq
    %v260 = vshrl.u32 %v259, 7
    %v261 = vsub.s32 0, %v260
    %v262 = vrot.slane %v257, %v261
    %v263 = vlaneseq
    %v264 = vshrl.u32 %v263, 7
    %v265 = vsub.s32 1, %v264
    %v266 = vrot.slane %v257, %v265
    %v267 = vlaneseq
    %v268 = vshrl.u32 %v267, 7
    %v269 = vsub.s32 2, %v268
    %v270 = vrot.slane %v257, %v269
    %v271 = vlaneseq
    %v272 = vshrl.u32 %v271, 7
    %v273 = vsub.s32 3, %v272
    %v274 = vrot.slane %v257, %v273
    %v275 = vlaneseq
    %v276 = vshrl.u32 %v275, 7
    %v277 = vsub.s32 4, %v276
    %v278 = vrot.slane %v257, %v277
    %v290 = vunpack.c.l.b16 %v47
    %v291 = vunpack.c.h.b16 %v47
    %v292 = vunpack.c.l.b16 %v48
    %v293 = vunpack.c.h.b16 %v48
    %v294 = vunpack.c.l.b16 %v49
    %v295 = vunpack.c.l.b16 %v50
    %v296 = vunpack.c.h.b16 %v50
    %v297 = vunpack.c.l.b16 %v51
    %v298 = vunpack.c.h.b16 %v51
    %v299 = vunpack.c.l.b16 %v52
    %v300 = vpack.c.b16 %v295, %v290
    %v301 = vpack.c.b16 %v296, %v291
    %v302 = vpack.c.b16 %v297, %v292
    %v303 = vpack.c.b16 %v298, %v293
    %v304 = vpack.c.b16 %v299, %v294
    %v513 = vunpack.c.l.b16 %v53
    %v514 = vunpack.c.h.b16 %v53
    %v515 = vunpack.c.l.b16 %v54
    %v516 = vunpack.c.h.b16 %v54
    %v517 = vunpack.c.l.b16 %v55
    %v518 = vunpack.c.l.b16 %v56
    %v519 = vunpack.c.h.b16 %v56
    %v520 = vunpack.c.l.b16 %v57
    %v521 = vunpack.c.h.b16 %v57
    %v522 = vunpack.c.l.b16 %v58
    %v523 = vunpack.c.l.b16 %v59
    %v524 = vunpack.c.h.b16 %v59
    %v525 = vunpack.c.l.b16 %v60
    %v526 = vunpack.c.h.b16 %v60
    %v527 = vunpack.c.l.b16 %v61
    %v528 = vunpack.c.l.b16 %v62
    %v529 = vunpack.c.h.b16 %v62
    %v530 = vunpack.c.l.b16 %v63
    %v531 = vunpack.c.h.b16 %v63
    %v532 = vunpack.c.l.b16 %v64
    %v533 = vunpack.c.l.b16 %v65
    %v534 = vunpack.c.h.b16 %v65
    %v535 = vunpack.c.l.b16 %v66
    %v536 = vunpack.c.h.b16 %v66
    %v537 = vunpack.c.l.b16 %v67
    %v538 = vunpack.c.l.b16 %v68
    %v539 = vunpack.c.h.b16 %v68
    %v540 = vunpack.c.l.b16 %v69
    %v541 = vunpack.c.h.b16 %v69
    %v542 = vunpack.c.l.b16 %v70
    %v543 = vunpack.c.l.b16 %v71
    %v544 = vunpack.c.h.b16 %v71
    %v545 = vunpack.c.l.b16 %v72
    %v546 = vunpack.c.h.b16 %v72
    %v547 = vunpack.c.l.b16 %v73
    %v548 = vunpack.c.l.b16 %v74
    %v549 = vunpack.c.h.b16 %v74
    %v550 = vunpack.c.l.b16 %v75
    %v551 = vunpack.c.h.b16 %v75
    %v552 = vunpack.c.l.b16 %v76
    %v553 = vunpack.c.l.b16 %v77
    %v554 = vunpack.c.h.b16 %v77
    %v555 = vunpack.c.l.b16 %v78
    %v556 = vunpack.c.h.b16 %v78
    %v557 = vunpack.c.l.b16 %v79
    %v558 = vunpack.c.l.b16 %v80
    %v559 = vunpack.c.h.b16 %v80
    %v560 = vunpack.c.l.b16 %v81
    %v561 = vunpack.c.h.b16 %v81
    %v562 = vunpack.c.l.b16 %v82
    %v563 = vunpack.c.l.b16 %v83
    %v564 = vunpack.c.h.b16 %v83
    %v565 = vunpack.c.l.b16 %v84
    %v566 = vunpack.c.h.b16 %v84
    %v567 = vunpack.c.l.b16 %v85
    %v568 = vunpack.c.l.b16 %v86
    %v569 = vunpack.c.h.b16 %v86
    %v570 = vunpack.c.l.b16 %v87
    %v571 = vunpack.c.h.b16 %v87
    %v572 = vunpack.c.l.b16 %v88
    %v573 = vunpack.c.l.b16 %v89
    %v574 = vunpack.c.h.b16 %v89
    %v575 = vunpack.c.l.b16 %v90
    %v576 = vunpack.c.h.b16 %v90
    %v577 = vunpack.c.l.b16 %v91
    %v578 = vunpack.c.l.b16 %v92
    %v579 = vunpack.c.h.b16 %v92
    %v580 = vunpack.c.l.b16 %v93
    %v581 = vunpack.c.h.b16 %v93
    %v582 = vunpack.c.l.b16 %v94
    %v583 = vunpack.c.l.b16 %v95
    %v584 = vunpack.c.h.b16 %v95
    %v585 = vunpack.c.l.b16 %v96
    %v586 = vunpack.c.h.b16 %v96
    %v587 = vunpack.c.l.b16 %v97
    %v588 = vunpack.c.l.b16 %v98
    %v589 = vunpack.c.h.b16 %v98
    %v590 = vunpack.c.l.b16 %v99
    %v591 = vunpack.c.h.b16 %v99
    %v592 = vunpack.c.l.b16 %v100
    %v593 = vunpack.c.l.b16 %v101
    %v594 = vunpack.c.h.b16 %v101
    %v595 = vunpack.c.l.b16 %v102
    %v596 = vunpack.c.h.b16 %v102
    %v597 = vunpack.c.l.b16 %v103
    %v598 = vunpack.c.l.b16 %v104
    %v599 = vunpack.c.h.b16 %v104
    %v600 = vunpack.c.l.b16 %v105
    %v601 = vunpack.c.h.b16 %v105
    %v602 = vunpack.c.l.b16 %v106
    %v603 = vunpack.c.l.b16 %v107
    %v604 = vunpack.c.h.b16 %v107
    %v605 = vunpack.c.l.b16 %v108
    %v606 = vunpack.c.h.b16 %v108
    %v607 = vunpack.c.l.b16 %v109
    %v608 = vunpack.c.l.b16 %v110
    %v609 = vunpack.c.h.b16 %v110
    %v610 = vunpack.c.l.b16 %v111
    %v611 = vunpack.c.h.b16 %v111
    %v612 = vunpack.c.l.b16 %v112
    %v613 = vunpack.c.l.b16 %v113
    %v614 = vunpack.c.h.b16 %v113
    %v615 = vunpack.c.l.b16 %v114
    %v616 = vunpack.c.h.b16 %v114
    %v617 = vunpack.c.l.b16 %v115
    %v618 = vunpack.c.l.b16 %v116
    %v619 = vunpack.c.h.b16 %v116
    %v620 = vunpack.c.l.b16 %v117
    %v621 = vunpack.c.h.b16 %v117
    %v622 = vunpack.c.l.b16 %v118
    %v623 = vunpack.c.l.b16 %v119
    %v624 = vunpack.c.h.b16 %v119
    %v625 = vunpack.c.l.b16 %v120
    %v626 = vunpack.c.h.b16 %v120
    %v627 = vunpack.c.l.b16 %v121
    %v628 = vunpack.c.l.b16 %v122
    %v629 = vunpack.c.h.b16 %v122
    %v630 = vunpack.c.l.b16 %v123
    %v631 = vunpack.c.h.b16 %v123
    %v632 = vunpack.c.l.b16 %v124
    %v633 = vunpack.c.l.b16 %v125
    %v634 = vunpack.c.h.b16 %v125
    %v635 = vunpack.c.l.b16 %v126
    %v636 = vunpack.c.h.b16 %v126
    %v637 = vunpack.c.l.b16 %v127
    %v638 = vunpack.c.l.b16 %v128
    %v639 = vunpack.c.h.b16 %v128
    %v640 = vunpack.c.l.b16 %v129
    %v641 = vunpack.c.h.b16 %v129
    %v642 = vunpack.c.l.b16 %v130
    %v643 = vunpack.c.l.b16 %v131
    %v644 = vunpack.c.h.b16 %v131
    %v645 = vunpack.c.l.b16 %v132
    %v646 = vunpack.c.h.b16 %v132
    %v647 = vunpack.c.l.b16 %v133
    %v648 = vunpack.c.l.b16 %v134
    %v649 = vunpack.c.h.b16 %v134
    %v650 = vunpack.c.l.b16 %v135
    %v651 = vunpack.c.h.b16 %v135
    %v652 = vunpack.c.l.b16 %v136
    %v653 = vunpack.c.l.b16 %v137
    %v654 = vunpack.c.h.b16 %v137
    %v655 = vunpack.c.l.b16 %v138
    %v656 = vunpack.c.h.b16 %v138
    %v657 = vunpack.c.l.b16 %v139
    %v658 = vunpack.c.l.b16 %v140
    %v659 = vunpack.c.h.b16 %v140
    %v660 = vunpack.c.l.b16 %v141
    %v661 = vunpack.c.h.b16 %v141
    %v662 = vunpack.c.l.b16 %v142
    %v663 = vunpack.c.l.b16 %v143
    %v664 = vunpack.c.h.b16 %v143
    %v665 = vunpack.c.l.b16 %v144
    %v666 = vunpack.c.h.b16 %v144
    %v667 = vunpack.c.l.b16 %v145
    %v668 = vunpack.c.l.b16 %v146
    %v669 = vunpack.c.h.b16 %v146
    %v670 = vunpack.c.l.b16 %v147
    %v671 = vunpack.c.h.b16 %v147
    %v672 = vunpack.c.l.b16 %v148
    %v673 = vunpack.c.l.b16 %v149
    %v674 = vunpack.c.h.b16 %v149
    %v675 = vunpack.c.l.b16 %v150
    %v676 = vunpack.c.h.b16 %v150
    %v677 = vunpack.c.l.b16 %v151
    %v678 = vunpack.c.l.b16 %v152
    %v679 = vunpack.c.h.b16 %v152
    %v680 = vunpack.c.l.b16 %v153
    %v681 = vunpack.c.h.b16 %v153
    %v682 = vunpack.c.l.b16 %v154
    %v683 = vunpack.c.l.b16 %v155
    %v684 = vunpack.c.h.b16 %v155
    %v685 = vunpack.c.l.b16 %v156
    %v686 = vunpack.c.h.b16 %v156
    %v687 = vunpack.c.l.b16 %v157
    %v688 = vunpack.c.l.b16 %v158
    %v689 = vunpack.c.h.b16 %v158
    %v690 = vunpack.c.l.b16 %v159
    %v691 = vunpack.c.h.b16 %v159
    %v692 = vunpack.c.l.b16 %v160
    %v693 = vunpack.c.l.b16 %v161
    %v694 = vunpack.c.h.b16 %v161
    %v695 = vunpack.c.l.b16 %v162
    %v696 = vunpack.c.h.b16 %v162
    %v697 = vunpack.c.l.b16 %v163
    %v698 = vunpack.c.l.b16 %v164
    %v699 = vunpack.c.h.b16 %v164
    %v700 = vunpack.c.l.b16 %v165
    %v701 = vunpack.c.h.b16 %v165
    %v702 = vunpack.c.l.b16 %v166
    %v703 = vunpack.c.l.b16 %v167
    %v704 = vunpack.c.h.b16 %v167
    %v705 = vunpack.c.l.b16 %v168
    %v706 = vunpack.c.h.b16 %v168
    %v707 = vunpack.c.l.b16 %v169
    %v708 = vunpack.c.l.b16 %v170
    %v709 = vunpack.c.h.b16 %v170
    %v710 = vunpack.c.l.b16 %v171
    %v711 = vunpack.c.h.b16 %v171
    %v712 = vunpack.c.l.b16 %v172
    %v713 = vunpack.c.l.b16 %v173
    %v714 = vunpack.c.h.b16 %v173
    %v715 = vunpack.c.l.b16 %v174
    %v716 = vunpack.c.h.b16 %v174
    %v717 = vunpack.c.l.b16 %v175
    %v718 = vunpack.c.l.b16 %v176
    %v719 = vunpack.c.h.b16 %v176
    %v720 = vunpack.c.l.b16 %v177
    %v721 = vunpack.c.h.b16 %v177
    %v722 = vunpack.c.l.b16 %v178
    %v723 = vunpack.c.l.b16 %v179
    %v724 = vunpack.c.h.b16 %v179
    %v725 = vunpack.c.l.b16 %v180
    %v726 = vunpack.c.h.b16 %v180
    %v727 = vunpack.c.l.b16 %v181
    %v728 = vunpack.c.l.b16 %v182
    %v729 = vunpack.c.h.b16 %v182
    %v730 = vunpack.c.l.b16 %v183
    %v731 = vunpack.c.h.b16 %v183
    %v732 = vunpack.c.l.b16 %v184
    %v733 = vunpack.c.l.b16 %v185
    %v734 = vunpack.c.h.b16 %v185
    %v735 = vunpack.c.l.b16 %v186
    %v736 = vunpack.c.h.b16 %v186
    %v737 = vunpack.c.l.b16 %v187
    %v738 = vunpack.c.l.b16 %v188
    %v739 = vunpack.c.h.b16 %v188
    %v740 = vunpack.c.l.b16 %v189
    %v741 = vunpack.c.h.b16 %v189
    %v742 = vunpack.c.l.b16 %v190
    %v743 = vunpack.c.l.b16 %v191
    %v744 = vunpack.c.h.b16 %v191
    %v745 = vunpack.c.l.b16 %v192
    %v746 = vunpack.c.h.b16 %v192
    %v747 = vunpack.c.l.b16 %v193
    %v748 = vunpack.c.l.b16 %v194
    %v749 = vunpack.c.h.b16 %v194
    %v750 = vunpack.c.l.b16 %v195
    %v751 = vunpack.c.h.b16 %v195
    %v752 = vunpack.c.l.b16 %v196
    %v753 = vunpack.c.l.b16 %v197
    %v754 = vunpack.c.h.b16 %v197
    %v755 = vunpack.c.l.b16 %v198
    %v756 = vunpack.c.h.b16 %v198
    %v757 = vunpack.c.l.b16 %v199
    %v758 = vunpack.c.l.b16 %v200
    %v759 = vunpack.c.h.b16 %v200
    %v760 = vunpack.c.l.b16 %v201
    %v761 = vunpack.c.h.b16 %v201
    %v762 = vunpack.c.l.b16 %v202
    %v763 = vunpack.c.l.b16 %v203
    %v764 = vunpack.c.h.b16 %v203
    %v765 = vunpack.c.l.b16 %v204
    %v766 = vunpack.c.h.b16 %v204
    %v767 = vunpack.c.l.b16 %v205
    %v768 = vunpack.c.l.b16 %v206
    %v769 = vunpack.c.h.b16 %v206
    %v770 = vunpack.c.l.b16 %v207
    %v771 = vunpack.c.h.b16 %v207
    %v772 = vunpack.c.l.b16 %v208
    %v773 = vunpack.c.l.b16 %v209
    %v774 = vunpack.c.h.b16 %v209
    %v775 = vunpack.c.l.b16 %v210
    %v776 = vunpack.c.h.b16 %v210
    %v777 = vunpack.c.l.b16 %v211
    %v778 = vunpack.c.l.b16 %v212
    %v779 = vunpack.c.h.b16 %v212
    %v780 = vunpack.c.l.b16 %v213
    %v781 = vunpack.c.h.b16 %v213
    %v782 = vunpack.c.l.b16 %v214
    %v783 = vunpack.c.l.b16 %v215
    %v784 = vunpack.c.h.b16 %v215
    %v785 = vunpack.c.l.b16 %v216
    %v786 = vunpack.c.h.b16 %v216
    %v787 = vunpack.c.l.b16 %v217
    %v788 = vunpack.c.l.b16 %v218
    %v789 = vunpack.c.h.b16 %v218
    %v790 = vunpack.c.l.b16 %v219
    %v791 = vunpack.c.h.b16 %v219
    %v792 = vunpack.c.l.b16 %v220
    %v793 = vunpack.c.l.b16 %v221
    %v794 = vunpack.c.h.b16 %v221
    %v795 = vunpack.c.l.b16 %v222
    %v796 = vunpack.c.h.b16 %v222
    %v797 = vunpack.c.l.b16 %v223
    %v798 = vunpack.c.l.b16 %v224
    %v799 = vunpack.c.h.b16 %v224
    %v800 = vunpack.c.l.b16 %v225
    %v801 = vunpack.c.h.b16 %v225
    %v802 = vunpack.c.l.b16 %v226
    %v803 = vunpack.c.l.b16 %v227
    %v804 = vunpack.c.h.b16 %v227
    %v805 = vunpack.c.l.b16 %v228
    %v806 = vunpack.c.h.b16 %v228
    %v807 = vunpack.c.l.b16 %v229
    %v808 = vunpack.c.l.b16 %v230
    %v809 = vunpack.c.h.b16 %v230
    %v810 = vunpack.c.l.b16 %v231
    %v811 = vunpack.c.h.b16 %v231
    %v812 = vunpack.c.l.b16 %v232
    %v813 = vunpack.c.l.b16 %v233
    %v814 = vunpack.c.h.b16 %v233
    %v815 = vunpack.c.l.b16 %v234
    %v816 = vunpack.c.h.b16 %v234
    %v817 = vunpack.c.l.b16 %v235
    %v818 = vunpack.c.l.b16 %v236
    %v819 = vunpack.c.h.b16 %v236
    %v820 = vunpack.c.l.b16 %v237
    %v821 = vunpack.c.h.b16 %v237
    %v822 = vunpack.c.l.b16 %v238
    %v823 = vunpack.c.l.b16 %v239
    %v824 = vunpack.c.h.b16 %v239
    %v825 = vunpack.c.l.b16 %v240
    %v826 = vunpack.c.h.b16 %v240
    %v827 = vunpack.c.l.b16 %v241
    %v828 = vunpack.c.l.b16 %v242
    %v829 = vunpack.c.h.b16 %v242
    %v830 = vunpack.c.l.b16 %v243
    %v831 = vunpack.c.h.b16 %v243
    %v832 = vunpack.c.l.b16 %v244
    %v833 = vunpack.c.l.b16 %v245
    %v834 = vunpack.c.h.b16 %v245
    %v835 = vunpack.c.l.b16 %v246
    %v836 = vunpack.c.h.b16 %v246
    %v837 = vunpack.c.l.b16 %v247
    %v838 = vunpack.c.l.b16 %v248
    %v839 = vunpack.c.h.b16 %v248
    %v840 = vunpack.c.l.b16 %v249
    %v841 = vunpack.c.h.b16 %v249
    %v842 = vunpack.c.l.b16 %v250
    %v843 = vunpack.c.l.b16 %v251
    %v844 = vunpack.c.h.b16 %v251
    %v845 = vunpack.c.l.b16 %v252
    %v846 = vunpack.c.h.b16 %v252
    %v847 = vunpack.c.l.b16 %v253
    %v848 = vunpack.c.l.b16 %v254
    %v849 = vunpack.c.h.b16 %v254
    %v850 = vunpack.c.l.b16 %v255
    %v851 = vunpack.c.h.b16 %v255
    %v852 = vunpack.c.l.b16 %v256
    %v853 = vpack.c.b16 %v518, %v513
    %v854 = vpack.c.b16 %v519, %v514
    %v855 = vpack.c.b16 %v520, %v515
    %v856 = vpack.c.b16 %v521, %v516
    %v857 = vpack.c.b16 %v522, %v517
    %v858 = vpack.c.b16 %v528, %v523
    %v859 = vpack.c.b16 %v529, %v524
    %v860 = vpack.c.b16 %v530, %v525
    %v861 = vpack.c.b16 %v531, %v526
    %v862 = vpack.c.b16 %v532, %v527
    %v863 = vpack.c.b16 %v538, %v533
    %v864 = vpack.c.b16 %v539, %v534
    %v865 = vpack.c.b16 %v540, %v535
    %v866 = vpack.c.b16 %v541, %v536
    %v867 = vpack.c.b16 %v542, %v537
    %v868 = vpack.c.b16 %v548, %v543
    %v869 = vpack.c.b16 %v549, %v544
    %v870 = vpack.c.b16 %v550, %v545
    %v871 = vpack.c.b16 %v551, %v546
    %v872 = vpack.c.b16 %v552, %v547
    %v873 = vpack.c.b16 %v558, %v553
    %v874 = vpack.c.b16 %v559, %v554
    %v875 = vpack.c.b16 %v560, %v555
    %v876 = vpack.c.b16 %v561, %v556
    %v877 = vpack.c.b16 %v562, %v557
    %v878 = vpack.c.b16 %v568, %v563
    %v879 = vpack.c.b16 %v569, %v564
    %v880 = vpack.c.b16 %v570, %v565
    %v881 = vpack.c.b16 %v571, %v566
    %v882 = vpack.c.b16 %v572, %v567
    %v883 = vpack.c.b16 %v578, %v573
    %v884 = vpack.c.b16 %v579, %v574
    %v885 = vpack.c.b16 %v580, %v575
    %v886 = vpack.c.b16 %v581, %v576
    %v887 = vpack.c.b16 %v582, %v577
    %v888 = vpack.c.b16 %v588, %v583
    %v889 = vpack.c.b16 %v589, %v584
    %v890 = vpack.c.b16 %v590, %v585
    %v891 = vpack.c.b16 %v591, %v586
    %v892 = vpack.c.b16 %v592, %v587
    %v893 = vpack.c.b16 %v598, %v593
    %v894 = vpack.c.b16 %v599, %v594
    %v895 = vpack.c.b16 %v600, %v595
    %v896 = vpack.c.b16 %v601, %v596
    %v897 = vpack.c.b16 %v602, %v597
    %v898 = vpack.c.b16 %v608, %v603
    %v899 = vpack.c.b16 %v609, %v604
    %v900 = vpack.c.b16 %v610, %v605
    %v901 = vpack.c.b16 %v611, %v606
    %v902 = vpack.c.b16 %v612, %v607
    %v903 = vpack.c.b16 %v618, %v613
    %v904 = vpack.c.b16 %v619, %v614
    %v905 = vpack.c.b16 %v620, %v615
    %v906 = vpack.c.b16 %v621, %v616
    %v907 = vpack.c.b16 %v622, %v617
    %v908 = vpack.c.b16 %v628, %v623
    %v909 = vpack.c.b16 %v629, %v624
    %v910 = vpack.c.b16 %v630, %v625
    %v911 = vpack.c.b16 %v631, %v626
    %v912 = vpack.c.b16 %v632, %v627
    %v913 = vpack.c.b16 %v638, %v633
    %v914 = vpack.c.b16 %v639, %v634
    %v915 = vpack.c.b16 %v640, %v635
    %v916 = vpack.c.b16 %v641, %v636
    %v917 = vpack.c.b16 %v642, %v637
    %v918 = vpack.c.b16 %v648, %v643
    %v919 = vpack.c.b16 %v649, %v644
    %v920 = vpack.c.b16 %v650, %v645
    %v921 = vpack.c.b16 %v651, %v646
    %v922 = vpack.c.b16 %v652, %v647
    %v923 = vpack.c.b16 %v658, %v653
    %v924 = vpack.c.b16 %v659, %v654
    %v925 = vpack.c.b16 %v660, %v655
    %v926 = vpack.c.b16 %v661, %v656
    %v927 = vpack.c.b16 %v662, %v657
    %v928 = vpack.c.b16 %v668, %v663
    %v929 = vpack.c.b16 %v669, %v664
    %v930 = vpack.c.b16 %v670, %v665
    %v931 = vpack.c.b16 %v671, %v666
    %v932 = vpack.c.b16 %v672, %v667
    %v933 = vpack.c.b16 %v678, %v673
    %v934 = vpack.c.b16 %v679, %v674
    %v935 = vpack.c.b16 %v680, %v675
    %v936 = vpack.c.b16 %v681, %v676
    %v937 = vpack.c.b16 %v682, %v677
    %v938 = vpack.c.b16 %v688, %v683
    %v939 = vpack.c.b16 %v689, %v684
    %v940 = vpack.c.b16 %v690, %v685
    %v941 = vpack.c.b16 %v691, %v686
    %v942 = vpack.c.b16 %v692, %v687
    %v943 = vpack.c.b16 %v698, %v693
    %v944 = vpack.c.b16 %v699, %v694
    %v945 = vpack.c.b16 %v700, %v695
    %v946 = vpack.c.b16 %v701, %v696
    %v947 = vpack.c.b16 %v702, %v697
    %v948 = vpack.c.b16 %v708, %v703
    %v949 = vpack.c.b16 %v709, %v704
    %v950 = vpack.c.b16 %v710, %v705
    %v951 = vpack.c.b16 %v711, %v706
    %v952 = vpack.c.b16 %v712, %v707
    %v953 = vpack.c.b16 %v718, %v713
    %v954 = vpack.c.b16 %v719, %v714
    %v955 = vpack.c.b16 %v720, %v715
    %v956 = vpack.c.b16 %v721, %v716
    %v957 = vpack.c.b16 %v722, %v717
    %v958 = vpack.c.b16 %v728, %v723
    %v959 = vpack.c.b16 %v729, %v724
    %v960 = vpack.c.b16 %v730, %v725
    %v961 = vpack.c.b16 %v731, %v726
    %v962 = vpack.c.b16 %v732, %v727
    %v963 = vpack.c.b16 %v738, %v733
    %v964 = vpack.c.b16 %v739, %v734
    %v965 = vpack.c.b16 %v740, %v735
    %v966 = vpack.c.b16 %v741, %v736
    %v967 = vpack.c.b16 %v742, %v737
    %v968 = vpack.c.b16 %v748, %v743
    %v969 = vpack.c.b16 %v749, %v744
    %v970 = vpack.c.b16 %v750, %v745
    %v971 = vpack.c.b16 %v751, %v746
    %v972 = vpack.c.b16 %v752, %v747
    %v973 = vpack.c.b16 %v758, %v753
    %v974 = vpack.c.b16 %v759, %v754
    %v975 = vpack.c.b16 %v760, %v755
    %v976 = vpack.c.b16 %v761, %v756
    %v977 = vpack.c.b16 %v762, %v757
    %v978 = vpack.c.b16 %v768, %v763
    %v979 = vpack.c.b16 %v769, %v764
    %v980 = vpack.c.b16 %v770, %v765
    %v981 = vpack.c.b16 %v771, %v766
    %v982 = vpack.c.b16 %v772, %v767
    %v983 = vpack.c.b16 %v778, %v773
    %v984 = vpack.c.b16 %v779, %v774
    %v985 = vpack.c.b16 %v780, %v775
    %v986 = vpack.c.b16 %v781, %v776
    %v987 = vpack.c.b16 %v782, %v777
    %v988 = vpack.c.b16 %v788, %v783
    %v989 = vpack.c.b16 %v789, %v784
    %v990 = vpack.c.b16 %v790, %v785
    %v991 = vpack.c.b16 %v791, %v786
    %v992 = vpack.c.b16 %v792, %v787
    %v993 = vpack.c.b16 %v798, %v793
    %v994 = vpack.c.b16 %v799, %v794
    %v995 = vpack.c.b16 %v800, %v795
    %v996 = vpack.c.b16 %v801, %v796
    %v997 = vpack.c.b16 %v802, %v797
    %v998 = vpack.c.b16 %v808, %v803
    %v999 = vpack.c.b16 %v809, %v804
    %v1000 = vpack.c.b16 %v810, %v805
    %v1001 = vpack.c.b16 %v811, %v806
    %v1002 = vpack.c.b16 %v812, %v807
    %v1003 = vpack.c.b16 %v818, %v813
    %v1004 = vpack.c.b16 %v819, %v814
    %v1005 = vpack.c.b16 %v820, %v815
    %v1006 = vpack.c.b16 %v821, %v816
    %v1007 = vpack.c.b16 %v822, %v817
    %v1008 = vpack.c.b16 %v828, %v823
    %v1009 = vpack.c.b16 %v829, %v824
    %v1010 = vpack.c.b16 %v830, %v825
    %v1011 = vpack.c.b16 %v831, %v826
    %v1012 = vpack.c.b16 %v832, %v827
    %v1013 = vpack.c.b16 %v838, %v833
    %v1014 = vpack.c.b16 %v839, %v834
    %v1015 = vpack.c.b16 %v840, %v835
    %v1016 = vpack.c.b16 %v841, %v836
    %v1017 = vpack.c.b16 %v842, %v837
    %v1018 = vpack.c.b16 %v848, %v843
    %v1019 = vpack.c.b16 %v849, %v844
    %v1020 = vpack.c.b16 %v850, %v845
    %v1021 = vpack.c.b16 %v851, %v846
    %v1022 = vpack.c.b16 %v852, %v847
    %vm1193 = vcmask 261120
    %v1195 = vsel %vm1193, %v304, 0
    %1197 = vmatprep.subr.bf16.mxu0 %v854
    %1198 = vmatpush1.bf16.msra.mxu0 %v853
    %1199 = vmatprep.subr.bf16.mxu0 %v859
    %1200 = vmatpush1.bf16.msra.mxu0 %v858
    %1201 = vmatprep.subr.bf16.mxu0 %v864
    %1202 = vmatpush1.bf16.msra.mxu0 %v863
    %1203 = vmatprep.subr.bf16.mxu0 %v869
    %1204 = vmatpush1.bf16.msra.mxu0 %v868
    %1205 = vmatprep.subr.bf16.mxu0 %v874
    %1206 = vmatpush1.bf16.msra.mxu0 %v873
    %1207 = vmatprep.subr.bf16.mxu0 %v879
    %1208 = vmatpush1.bf16.msra.mxu0 %v878
    %1209 = vmatprep.subr.bf16.mxu0 %v884
    %1210 = vmatpush1.bf16.msra.mxu0 %v883
    %1211 = vmatprep.subr.bf16.mxu0 %v889
    %1212 = vmatpush1.bf16.msra.mxu0 %v888
    %1213 = vmatprep.subr.bf16.mxu0 %v894
    %1214 = vmatpush1.bf16.msra.mxu0 %v893
    %1215 = vmatprep.subr.bf16.mxu0 %v899
    %1216 = vmatpush1.bf16.msra.mxu0 %v898
    %1217 = vmatprep.subr.bf16.mxu0 %v904
    %1218 = vmatpush1.bf16.msra.mxu0 %v903
    %1219 = vmatprep.subr.bf16.mxu0 %v909
    %1220 = vmatpush1.bf16.msra.mxu0 %v908
    %1221 = vmatprep.subr.bf16.mxu0 %v914
    %1222 = vmatpush1.bf16.msra.mxu0 %v913
    %1223 = vmatprep.subr.bf16.mxu0 %v919
    %1224 = vmatpush1.bf16.msra.mxu0 %v918
    %1225 = vmatprep.subr.bf16.mxu0 %v924
    %1226 = vmatpush1.bf16.msra.mxu0 %v923
    %1227 = vmatprep.subr.bf16.mxu0 %v929
    %1228 = vmatpush1.bf16.msra.mxu0 %v928
    %1229 = vmatprep.mubr.bf16.mxu0 %v301
    %1230 = vmatmul.mubr.bf16.gmra.mrb[0].mxu0 %v300
    %v1231 = vpop.f32.mrb[0].mxu0
    %v1232 = vadd.f32 %v262, %v1231
    %v1233 = vpop.f32.mrb[0].mxu0
    %v1234 = vadd.f32 %v266, %v1233
    %v1235 = vpop.f32.mrb[0].mxu0
    %v1236 = vadd.f32 %v262, %v1235
    %v1237 = vpop.f32.mrb[0].mxu0
    %v1238 = vadd.f32 %v266, %v1237
    %1239 = vdwg.mxu0
    %1240 = vmatprep.subr.bf16.mxu0 %v934
    %1241 = vmatpush1.bf16.msra.mxu0 %v933
    %1242 = vmatprep.subr.bf16.mxu0 %v939
    %1243 = vmatpush1.bf16.msra.mxu0 %v938
    %1244 = vmatprep.subr.bf16.mxu0 %v944
    %1245 = vmatpush1.bf16.msra.mxu0 %v943
    %1246 = vmatprep.subr.bf16.mxu0 %v949
    %1247 = vmatpush1.bf16.msra.mxu0 %v948
    %1248 = vmatprep.subr.bf16.mxu0 %v954
    %1249 = vmatpush1.bf16.msra.mxu0 %v953
    %1250 = vmatprep.subr.bf16.mxu0 %v959
    %1251 = vmatpush1.bf16.msra.mxu0 %v958
    %1252 = vmatprep.subr.bf16.mxu0 %v964
    %1253 = vmatpush1.bf16.msra.mxu0 %v963
    %1254 = vmatprep.subr.bf16.mxu0 %v969
    %1255 = vmatpush1.bf16.msra.mxu0 %v968
    %1256 = vmatprep.subr.bf16.mxu0 %v974
    %1257 = vmatpush1.bf16.msra.mxu0 %v973
    %1258 = vmatprep.subr.bf16.mxu0 %v979
    %1259 = vmatpush1.bf16.msra.mxu0 %v978
    %1260 = vmatprep.subr.bf16.mxu0 %v984
    %1261 = vmatpush1.bf16.msra.mxu0 %v983
    %1262 = vmatprep.subr.bf16.mxu0 %v989
    %1263 = vmatpush1.bf16.msra.mxu0 %v988
    %1264 = vmatprep.subr.bf16.mxu0 %v994
    %1265 = vmatpush1.bf16.msra.mxu0 %v993
    %1266 = vmatprep.subr.bf16.mxu0 %v999
    %1267 = vmatpush1.bf16.msra.mxu0 %v998
    %1268 = vmatprep.subr.bf16.mxu0 %v1004
    %1269 = vmatpush1.bf16.msra.mxu0 %v1003
    %1270 = vmatprep.subr.bf16.mxu0 %v1009
    %1271 = vmatpush1.bf16.msra.mxu0 %v1008
    %1272 = vmatprep.mubr.bf16.mxu0 %v303
    %1273 = vmatmul.mubr.bf16.gmra.mrb[0].mxu0 %v302
    %v1274 = vpop.f32.mrb[0].mxu0
    %v1275 = vadd.f32 %v1232, %v1274
    %v1276 = vpop.f32.mrb[0].mxu0
    %v1277 = vadd.f32 %v1234, %v1276
    %v1278 = vpop.f32.mrb[0].mxu0
    %v1279 = vadd.f32 %v1236, %v1278
    %v1280 = vpop.f32.mrb[0].mxu0
    %v1281 = vadd.f32 %v1238, %v1280
    %1282 = vdwg.mxu0
    %1283 = vmatprep.subr.bf16.mxu0 %v1014
    %1284 = vmatpush1.bf16.msra.mxu0 %v1013
    %1285 = vmatprep.subr.bf16.mxu0 %v1019
    %1286 = vmatpush1.bf16.msra.mxu0 %v1018
    %1287 = vmatprep.subr.bf16.mxu0 0
    %1288 = vmatpush1.bf16.msra.mxu0 0
    %1289 = vmatprep.subr.bf16.mxu0 0
    %1290 = vmatpush1.bf16.msra.mxu0 0
    %1291 = vmatprep.subr.bf16.mxu0 0
    %1292 = vmatpush1.bf16.msra.mxu0 0
    %1293 = vmatprep.subr.bf16.mxu0 0
    %1294 = vmatpush1.bf16.msra.mxu0 0
    %1295 = vmatprep.subr.bf16.mxu0 0
    %1296 = vmatpush1.bf16.msra.mxu0 0
    %1297 = vmatprep.subr.bf16.mxu0 0
    %1298 = vmatpush1.bf16.msra.mxu0 0
    %1299 = vmatprep.subr.bf16.mxu0 0
    %1300 = vmatpush1.bf16.msra.mxu0 0
    %1301 = vmatprep.subr.bf16.mxu0 0
    %1302 = vmatpush1.bf16.msra.mxu0 0
    %1303 = vmatprep.subr.bf16.mxu0 0
    %1304 = vmatpush1.bf16.msra.mxu0 0
    %1305 = vmatprep.subr.bf16.mxu0 0
    %1306 = vmatpush1.bf16.msra.mxu0 0
    %1307 = vmatprep.subr.bf16.mxu0 0
    %1308 = vmatpush1.bf16.msra.mxu0 0
    %1309 = vmatprep.subr.bf16.mxu0 0
    %1310 = vmatpush1.bf16.msra.mxu0 0
    %1311 = vmatprep.subr.bf16.mxu0 0
    %1312 = vmatpush1.bf16.msra.mxu0 0
    %1313 = vmatprep.subr.bf16.mxu0 0
    %1314 = vmatpush1.bf16.msra.mxu0 0
    %1315 = vmatprep.mubr.bf16.mxu0 0
    %1316 = vmatmul.mubr.bf16.gmra.mrb[0].mxu0 %v1195
    %v1317 = vpop.f32.mrb[0].mxu0
    %v1318 = vadd.f32 %v1275, %v1317
    %v1319 = vpop.f32.mrb[0].mxu0
    %v1320 = vadd.f32 %v1277, %v1319
    %v1321 = vpop.f32.mrb[0].mxu0
    %v1322 = vadd.f32 %v1279, %v1321
    %v1323 = vpop.f32.mrb[0].mxu0
    %v1324 = vadd.f32 %v1281, %v1323
    %1325 = vdwg.mxu0
    %1326 = vmatprep.subr.bf16.mxu0 %v856
    %1327 = vmatpush1.bf16.msra.mxu0 %v855
    %1328 = vmatprep.subr.bf16.mxu0 %v861
    %1329 = vmatpush1.bf16.msra.mxu0 %v860
    %1330 = vmatprep.subr.bf16.mxu0 %v866
    %1331 = vmatpush1.bf16.msra.mxu0 %v865
    %1332 = vmatprep.subr.bf16.mxu0 %v871
    %1333 = vmatpush1.bf16.msra.mxu0 %v870
    %1334 = vmatprep.subr.bf16.mxu0 %v876
    %1335 = vmatpush1.bf16.msra.mxu0 %v875
    %1336 = vmatprep.subr.bf16.mxu0 %v881
    %1337 = vmatpush1.bf16.msra.mxu0 %v880
    %1338 = vmatprep.subr.bf16.mxu0 %v886
    %1339 = vmatpush1.bf16.msra.mxu0 %v885
    %1340 = vmatprep.subr.bf16.mxu0 %v891
    %1341 = vmatpush1.bf16.msra.mxu0 %v890
    %1342 = vmatprep.subr.bf16.mxu0 %v896
    %1343 = vmatpush1.bf16.msra.mxu0 %v895
    %1344 = vmatprep.subr.bf16.mxu0 %v901
    %1345 = vmatpush1.bf16.msra.mxu0 %v900
    %1346 = vmatprep.subr.bf16.mxu0 %v906
    %1347 = vmatpush1.bf16.msra.mxu0 %v905
    %1348 = vmatprep.subr.bf16.mxu0 %v911
    %1349 = vmatpush1.bf16.msra.mxu0 %v910
    %1350 = vmatprep.subr.bf16.mxu0 %v916
    %1351 = vmatpush1.bf16.msra.mxu0 %v915
    %1352 = vmatprep.subr.bf16.mxu0 %v921
    %1353 = vmatpush1.bf16.msra.mxu0 %v920
    %1354 = vmatprep.subr.bf16.mxu0 %v926
    %1355 = vmatpush1.bf16.msra.mxu0 %v925
    %1356 = vmatprep.subr.bf16.mxu0 %v931
    %1357 = vmatpush1.bf16.msra.mxu0 %v930
    %1358 = vmatprep.mubr.bf16.mxu0 %v301
    %1359 = vmatmul.mubr.bf16.gmra.mrb[0].mxu0 %v300
    %v1360 = vpop.f32.mrb[0].mxu0
    %v1361 = vadd.f32 %v270, %v1360
    %v1362 = vpop.f32.mrb[0].mxu0
    %v1363 = vadd.f32 %v274, %v1362
    %v1364 = vpop.f32.mrb[0].mxu0
    %v1365 = vadd.f32 %v270, %v1364
    %v1366 = vpop.f32.mrb[0].mxu0
    %v1367 = vadd.f32 %v274, %v1366
    %1368 = vdwg.mxu0
    %1369 = vmatprep.subr.bf16.mxu0 %v936
    %1370 = vmatpush1.bf16.msra.mxu0 %v935
    %1371 = vmatprep.subr.bf16.mxu0 %v941
    %1372 = vmatpush1.bf16.msra.mxu0 %v940
    %1373 = vmatprep.subr.bf16.mxu0 %v946
    %1374 = vmatpush1.bf16.msra.mxu0 %v945
    %1375 = vmatprep.subr.bf16.mxu0 %v951
    %1376 = vmatpush1.bf16.msra.mxu0 %v950
    %1377 = vmatprep.subr.bf16.mxu0 %v956
    %1378 = vmatpush1.bf16.msra.mxu0 %v955
    %1379 = vmatprep.subr.bf16.mxu0 %v961
    %1380 = vmatpush1.bf16.msra.mxu0 %v960
    %1381 = vmatprep.subr.bf16.mxu0 %v966
    %1382 = vmatpush1.bf16.msra.mxu0 %v965
    %1383 = vmatprep.subr.bf16.mxu0 %v971
    %1384 = vmatpush1.bf16.msra.mxu0 %v970
    %1385 = vmatprep.subr.bf16.mxu0 %v976
    %1386 = vmatpush1.bf16.msra.mxu0 %v975
    %1387 = vmatprep.subr.bf16.mxu0 %v981
    %1388 = vmatpush1.bf16.msra.mxu0 %v980
    %1389 = vmatprep.subr.bf16.mxu0 %v986
    %1390 = vmatpush1.bf16.msra.mxu0 %v985
    %1391 = vmatprep.subr.bf16.mxu0 %v991
    %1392 = vmatpush1.bf16.msra.mxu0 %v990
    %1393 = vmatprep.subr.bf16.mxu0 %v996
    %1394 = vmatpush1.bf16.msra.mxu0 %v995
    %1395 = vmatprep.subr.bf16.mxu0 %v1001
    %1396 = vmatpush1.bf16.msra.mxu0 %v1000
    %1397 = vmatprep.subr.bf16.mxu0 %v1006
    %1398 = vmatpush1.bf16.msra.mxu0 %v1005
    %1399 = vmatprep.subr.bf16.mxu0 %v1011
    %1400 = vmatpush1.bf16.msra.mxu0 %v1010
    %1401 = vmatprep.mubr.bf16.mxu0 %v303
    %1402 = vmatmul.mubr.bf16.gmra.mrb[0].mxu0 %v302
    %v1403 = vpop.f32.mrb[0].mxu0
    %v1404 = vadd.f32 %v1361, %v1403
    %v1405 = vpop.f32.mrb[0].mxu0
    %v1406 = vadd.f32 %v1363, %v1405
    %v1407 = vpop.f32.mrb[0].mxu0
    %v1408 = vadd.f32 %v1365, %v1407
    %v1409 = vpop.f32.mrb[0].mxu0
    %v1410 = vadd.f32 %v1367, %v1409
    %1411 = vdwg.mxu0
    %1412 = vmatprep.subr.bf16.mxu0 %v1016
    %1413 = vmatpush1.bf16.msra.mxu0 %v1015
    %1414 = vmatprep.subr.bf16.mxu0 %v1021
    %1415 = vmatpush1.bf16.msra.mxu0 %v1020
    %1416 = vmatprep.subr.bf16.mxu0 0
    %1417 = vmatpush1.bf16.msra.mxu0 0
    %1418 = vmatprep.subr.bf16.mxu0 0
    %1419 = vmatpush1.bf16.msra.mxu0 0
    %1420 = vmatprep.subr.bf16.mxu0 0
    %1421 = vmatpush1.bf16.msra.mxu0 0
    %1422 = vmatprep.subr.bf16.mxu0 0
    %1423 = vmatpush1.bf16.msra.mxu0 0
    %1424 = vmatprep.subr.bf16.mxu0 0
    %1425 = vmatpush1.bf16.msra.mxu0 0
    %1426 = vmatprep.subr.bf16.mxu0 0
    %1427 = vmatpush1.bf16.msra.mxu0 0
    %1428 = vmatprep.subr.bf16.mxu0 0
    %1429 = vmatpush1.bf16.msra.mxu0 0
    %1430 = vmatprep.subr.bf16.mxu0 0
    %1431 = vmatpush1.bf16.msra.mxu0 0
    %1432 = vmatprep.subr.bf16.mxu0 0
    %1433 = vmatpush1.bf16.msra.mxu0 0
    %1434 = vmatprep.subr.bf16.mxu0 0
    %1435 = vmatpush1.bf16.msra.mxu0 0
    %1436 = vmatprep.subr.bf16.mxu0 0
    %1437 = vmatpush1.bf16.msra.mxu0 0
    %1438 = vmatprep.subr.bf16.mxu0 0
    %1439 = vmatpush1.bf16.msra.mxu0 0
    %1440 = vmatprep.subr.bf16.mxu0 0
    %1441 = vmatpush1.bf16.msra.mxu0 0
    %1442 = vmatprep.subr.bf16.mxu0 0
    %1443 = vmatpush1.bf16.msra.mxu0 0
    %1444 = vmatprep.mubr.bf16.mxu0 0
    %1445 = vmatmul.mubr.bf16.gmra.mrb[0].mxu0 %v1195
    %v1446 = vpop.f32.mrb[0].mxu0
    %v1447 = vadd.f32 %v1404, %v1446
    %v1448 = vpop.f32.mrb[0].mxu0
    %v1449 = vadd.f32 %v1406, %v1448
    %v1450 = vpop.f32.mrb[0].mxu0
    %v1451 = vadd.f32 %v1408, %v1450
    %v1452 = vpop.f32.mrb[0].mxu0
    %v1453 = vadd.f32 %v1410, %v1452
    %1454 = vdwg.mxu0
    %1455 = vmatprep.subr.bf16.mxu0 0
    %1456 = vmatpush1.bf16.msra.mxu0 %v857
    %1457 = vmatprep.subr.bf16.mxu0 0
    %1458 = vmatpush1.bf16.msra.mxu0 %v862
    %1459 = vmatprep.subr.bf16.mxu0 0
    %1460 = vmatpush1.bf16.msra.mxu0 %v867
    %1461 = vmatprep.subr.bf16.mxu0 0
    %1462 = vmatpush1.bf16.msra.mxu0 %v872
    %1463 = vmatprep.subr.bf16.mxu0 0
    %1464 = vmatpush1.bf16.msra.mxu0 %v877
    %1465 = vmatprep.subr.bf16.mxu0 0
    %1466 = vmatpush1.bf16.msra.mxu0 %v882
    %1467 = vmatprep.subr.bf16.mxu0 0
    %1468 = vmatpush1.bf16.msra.mxu0 %v887
    %1469 = vmatprep.subr.bf16.mxu0 0
    %1470 = vmatpush1.bf16.msra.mxu0 %v892
    %1471 = vmatprep.subr.bf16.mxu0 0
    %1472 = vmatpush1.bf16.msra.mxu0 %v897
    %1473 = vmatprep.subr.bf16.mxu0 0
    %1474 = vmatpush1.bf16.msra.mxu0 %v902
    %1475 = vmatprep.subr.bf16.mxu0 0
    %1476 = vmatpush1.bf16.msra.mxu0 %v907
    %1477 = vmatprep.subr.bf16.mxu0 0
    %1478 = vmatpush1.bf16.msra.mxu0 %v912
    %1479 = vmatprep.subr.bf16.mxu0 0
    %1480 = vmatpush1.bf16.msra.mxu0 %v917
    %1481 = vmatprep.subr.bf16.mxu0 0
    %1482 = vmatpush1.bf16.msra.mxu0 %v922
    %1483 = vmatprep.subr.bf16.mxu0 0
    %1484 = vmatpush1.bf16.msra.mxu0 %v927
    %1485 = vmatprep.subr.bf16.mxu0 0
    %1486 = vmatpush1.bf16.msra.mxu0 %v932
    %1487 = vmatprep.mubr.bf16.mxu0 %v301
    %1488 = vmatmul.mubr.bf16.gmra.mrb[0].mxu0 %v300
    %v1489 = vpop.f32.mrb[0].mxu0
    %v1490 = vadd.f32 %v278, %v1489
    %v1491 = vpop.f32.mrb[0].mxu0
    %v1492 = vpop.f32.mrb[0].mxu0
    %v1493 = vadd.f32 %v278, %v1492
    %v1494 = vpop.f32.mrb[0].mxu0
    %1495 = vdwg.mxu0
    %1496 = vmatprep.subr.bf16.mxu0 0
    %1497 = vmatpush1.bf16.msra.mxu0 %v937
    %1498 = vmatprep.subr.bf16.mxu0 0
    %1499 = vmatpush1.bf16.msra.mxu0 %v942
    %1500 = vmatprep.subr.bf16.mxu0 0
    %1501 = vmatpush1.bf16.msra.mxu0 %v947
    %1502 = vmatprep.subr.bf16.mxu0 0
    %1503 = vmatpush1.bf16.msra.mxu0 %v952
    %1504 = vmatprep.subr.bf16.mxu0 0
    %1505 = vmatpush1.bf16.msra.mxu0 %v957
    %1506 = vmatprep.subr.bf16.mxu0 0
    %1507 = vmatpush1.bf16.msra.mxu0 %v962
    %1508 = vmatprep.subr.bf16.mxu0 0
    %1509 = vmatpush1.bf16.msra.mxu0 %v967
    %1510 = vmatprep.subr.bf16.mxu0 0
    %1511 = vmatpush1.bf16.msra.mxu0 %v972
    %1512 = vmatprep.subr.bf16.mxu0 0
    %1513 = vmatpush1.bf16.msra.mxu0 %v977
    %1514 = vmatprep.subr.bf16.mxu0 0
    %1515 = vmatpush1.bf16.msra.mxu0 %v982
    %1516 = vmatprep.subr.bf16.mxu0 0
    %1517 = vmatpush1.bf16.msra.mxu0 %v987
    %1518 = vmatprep.subr.bf16.mxu0 0
    %1519 = vmatpush1.bf16.msra.mxu0 %v992
    %1520 = vmatprep.subr.bf16.mxu0 0
    %1521 = vmatpush1.bf16.msra.mxu0 %v997
    %1522 = vmatprep.subr.bf16.mxu0 0
    %1523 = vmatpush1.bf16.msra.mxu0 %v1002
    %1524 = vmatprep.subr.bf16.mxu0 0
    %1525 = vmatpush1.bf16.msra.mxu0 %v1007
    %1526 = vmatprep.subr.bf16.mxu0 0
    %1527 = vmatpush1.bf16.msra.mxu0 %v1012
    %1528 = vmatprep.mubr.bf16.mxu0 %v303
    %1529 = vmatmul.mubr.bf16.gmra.mrb[0].mxu0 %v302
    %v1530 = vpop.f32.mrb[0].mxu0
    %v1531 = vadd.f32 %v1490, %v1530
    %v1532 = vpop.f32.mrb[0].mxu0
    %v1533 = vpop.f32.mrb[0].mxu0
    %v1534 = vadd.f32 %v1493, %v1533
    %v1535 = vpop.f32.mrb[0].mxu0
    %1536 = vdwg.mxu0
    %1537 = vmatprep.subr.bf16.mxu0 0
    %1538 = vmatpush1.bf16.msra.mxu0 %v1017
    %1539 = vmatprep.subr.bf16.mxu0 0
    %1540 = vmatpush1.bf16.msra.mxu0 %v1022
    %1541 = vmatprep.subr.bf16.mxu0 0
    %1542 = vmatpush1.bf16.msra.mxu0 0
    %1543 = vmatprep.subr.bf16.mxu0 0
    %1544 = vmatpush1.bf16.msra.mxu0 0
    %1545 = vmatprep.subr.bf16.mxu0 0
    %1546 = vmatpush1.bf16.msra.mxu0 0
    %1547 = vmatprep.subr.bf16.mxu0 0
    %1548 = vmatpush1.bf16.msra.mxu0 0
    %1549 = vmatprep.subr.bf16.mxu0 0
    %1550 = vmatpush1.bf16.msra.mxu0 0
    %1551 = vmatprep.subr.bf16.mxu0 0
    %1552 = vmatpush1.bf16.msra.mxu0 0
    %1553 = vmatprep.subr.bf16.mxu0 0
    %1554 = vmatpush1.bf16.msra.mxu0 0
    %1555 = vmatprep.subr.bf16.mxu0 0
    %1556 = vmatpush1.bf16.msra.mxu0 0
    %1557 = vmatprep.subr.bf16.mxu0 0
    %1558 = vmatpush1.bf16.msra.mxu0 0
    %1559 = vmatprep.subr.bf16.mxu0 0
    %1560 = vmatpush1.bf16.msra.mxu0 0
    %1561 = vmatprep.subr.bf16.mxu0 0
    %1562 = vmatpush1.bf16.msra.mxu0 0
    %1563 = vmatprep.subr.bf16.mxu0 0
    %1564 = vmatpush1.bf16.msra.mxu0 0
    %1565 = vmatprep.subr.bf16.mxu0 0
    %1566 = vmatpush1.bf16.msra.mxu0 0
    %1567 = vmatprep.subr.bf16.mxu0 0
    %1568 = vmatpush1.bf16.msra.mxu0 0
    %1569 = vmatprep.mubr.bf16.mxu0 0
    %1570 = vmatmul.mubr.bf16.gmra.mrb[0].mxu0 %v1195
    %v1571 = vpop.f32.mrb[0].mxu0
    %v1572 = vadd.f32 %v1531, %v1571
    %v1573 = vpop.f32.mrb[0].mxu0
    %v1574 = vpop.f32.mrb[0].mxu0
    %v1575 = vadd.f32 %v1534, %v1574
    %v1576 = vpop.f32.mrb[0].mxu0
    %1577 = vdwg.mxu0
    %v1578 = vadd.f32 %v1318, %v1322
    %v1579 = vrot.slane %v1578, 4
    %v1580 = vadd.f32 %v1578, %v1579
    %v1581 = vrot.slane %v1580, 2
    %v1582 = vadd.f32 %v1580, %v1581
    %v1583 = vrot.slane %v1582, 1
    %v1584 = vadd.f32 %v1582, %v1583
    %v1585 = vadd.f32 %v1320, %v1324
    %v1586 = vrot.slane %v1585, 4
    %v1587 = vadd.f32 %v1585, %v1586
    %v1588 = vrot.slane %v1587, 2
    %v1589 = vadd.f32 %v1587, %v1588
    %v1590 = vrot.slane %v1589, 1
    %v1591 = vadd.f32 %v1589, %v1590
    %v1592 = vadd.f32 %v1447, %v1451
    %v1593 = vrot.slane %v1592, 4
    %v1594 = vadd.f32 %v1592, %v1593
    %v1595 = vrot.slane %v1594, 2
    %v1596 = vadd.f32 %v1594, %v1595
    %v1597 = vrot.slane %v1596, 1
    %v1598 = vadd.f32 %v1596, %v1597
    %v1599 = vadd.f32 %v1449, %v1453
    %v1600 = vrot.slane %v1599, 4
    %v1601 = vadd.f32 %v1599, %v1600
    %v1602 = vrot.slane %v1601, 2
    %v1603 = vadd.f32 %v1601, %v1602
    %v1604 = vrot.slane %v1603, 1
    %v1605 = vadd.f32 %v1603, %v1604
    %v1606 = vsel %vm1193, %v1572, 0.0
    %v1607 = vsel %vm1193, %v1575, 0.0
    %v1608 = vadd.f32 %v1606, %v1607
    %v1609 = vrot.slane %v1608, 4
    %v1610 = vadd.f32 %v1608, %v1609
    %v1611 = vrot.slane %v1610, 2
    %v1612 = vadd.f32 %v1610, %v1611
    %v1613 = vrot.slane %v1612, 1
    %v1614 = vadd.f32 %v1612, %v1613
    %v1620 = vcombine.low %v1584, %v1591
    %v1621 = vcombine.low %v1598, %v1605
    %v1623 = vunpack.c.l.s4 1966171168
    %v1624 = vunpack.c.0.s8 %v1623
    %v1625 = vlaneseq
    %v1626 = vshrl.u32 %v1625, 7
    %v1627 = vsub.s32 %v1624, %v1626
    %v1628 = vrot.slane %v1620, %v1627
    %v1630 = vunpack.c.l.s4 1966171168
    %v1631 = vunpack.c.0.s8 %v1630
    %v1632 = vlaneseq
    %v1633 = vshrl.u32 %v1632, 7
    %v1634 = vsub.s32 %v1631, %v1633
    %v1635 = vrot.slane %v1621, %v1634
    %v1637 = vunpack.c.l.s4 1966171168
    %v1638 = vunpack.c.0.s8 %v1637
    %v1639 = vlaneseq
    %v1640 = vshrl.u32 %v1639, 7
    %v1641 = vsub.s32 %v1638, %v1640
    %v1642 = vrot.slane %v1614, %v1641
    %v1643 = vcombine.low %v1628, %v1635
    %v1645 = vunpack.c.l.s4 1966171168
    %v1646 = vunpack.c.0.s8 %v1645
    %v1647 = vlaneseq
    %v1648 = vshrl.u32 %v1647, 7
    %v1649 = vsub.s32 %v1646, %v1648
    %v1650 = vrot.slane %v1643, %v1649
    %v1652 = vunpack.c.l.s4 1966171168
    %v1653 = vunpack.c.0.s8 %v1652
    %v1654 = vlaneseq
    %v1655 = vshrl.u32 %v1654, 7
    %v1656 = vsub.s32 %v1653, %v1655
    %v1657 = vrot.slane %v1642, %v1656
    %v1658 = vcombine.low %v1650, %v1657
    %v1660 = vlaneseq
    %vm1661 = vcmp.ge.s32.totalorder %v1660, 0
    %vm1662 = vcmp.lt.s32.totalorder %v1660, 544
    %vm1663 = vmand %vm1661, %vm1662
    %1664 = vst.msk [vmem:[#allocation7] sm:$0x1f] %vm1663, %v1658
    %v1665 = vmul.f32 %v1318, %v1318
    %v1666 = vmul.f32 %v1320, %v1320
    %v1667 = vmul.f32 %v1447, %v1447
    %v1668 = vmul.f32 %v1449, %v1449
    %v1669 = vmul.f32 %v1572, %v1572
    %v1670 = vmul.f32 %v1322, %v1322
    %v1671 = vmul.f32 %v1324, %v1324
    %v1672 = vmul.f32 %v1451, %v1451
    %v1673 = vmul.f32 %v1453, %v1453
    %v1674 = vmul.f32 %v1575, %v1575
    %v1675 = vadd.f32 %v1665, %v1670
    %v1676 = vrot.slane %v1675, 4
    %v1677 = vadd.f32 %v1675, %v1676
    %v1678 = vrot.slane %v1677, 2
    %v1679 = vadd.f32 %v1677, %v1678
    %v1680 = vrot.slane %v1679, 1
    %v1681 = vadd.f32 %v1679, %v1680
    %v1682 = vadd.f32 %v1666, %v1671
    %v1683 = vrot.slane %v1682, 4
    %v1684 = vadd.f32 %v1682, %v1683
    %v1685 = vrot.slane %v1684, 2
    %v1686 = vadd.f32 %v1684, %v1685
    %v1687 = vrot.slane %v1686, 1
    %v1688 = vadd.f32 %v1686, %v1687
    %v1689 = vadd.f32 %v1667, %v1672
    %v1690 = vrot.slane %v1689, 4
    %v1691 = vadd.f32 %v1689, %v1690
    %v1692 = vrot.slane %v1691, 2
    %v1693 = vadd.f32 %v1691, %v1692
    %v1694 = vrot.slane %v1693, 1
    %v1695 = vadd.f32 %v1693, %v1694
    %v1696 = vadd.f32 %v1668, %v1673
    %v1697 = vrot.slane %v1696, 4
    %v1698 = vadd.f32 %v1696, %v1697
    %v1699 = vrot.slane %v1698, 2
    %v1700 = vadd.f32 %v1698, %v1699
    %v1701 = vrot.slane %v1700, 1
    %v1702 = vadd.f32 %v1700, %v1701
    %v1703 = vsel %vm1193, %v1669, 0.0
    %v1704 = vsel %vm1193, %v1674, 0.0
    %v1705 = vadd.f32 %v1703, %v1704
    %v1706 = vrot.slane %v1705, 4
    %v1707 = vadd.f32 %v1705, %v1706
    %v1708 = vrot.slane %v1707, 2
    %v1709 = vadd.f32 %v1707, %v1708
    %v1710 = vrot.slane %v1709, 1
    %v1711 = vadd.f32 %v1709, %v1710
    %v1717 = vcombine.low %v1681, %v1688
    %v1718 = vcombine.low %v1695, %v1702
    %v1720 = vunpack.c.l.s4 1966171168
    %v1721 = vunpack.c.0.s8 %v1720
    %v1722 = vlaneseq
    %v1723 = vshrl.u32 %v1722, 7
    %v1724 = vsub.s32 %v1721, %v1723
    %v1725 = vrot.slane %v1717, %v1724
    %v1727 = vunpack.c.l.s4 1966171168
    %v1728 = vunpack.c.0.s8 %v1727
    %v1729 = vlaneseq
    %v1730 = vshrl.u32 %v1729, 7
    %v1731 = vsub.s32 %v1728, %v1730
    %v1732 = vrot.slane %v1718, %v1731
    %v1734 = vunpack.c.l.s4 1966171168
    %v1735 = vunpack.c.0.s8 %v1734
    %v1736 = vlaneseq
    %v1737 = vshrl.u32 %v1736, 7
    %v1738 = vsub.s32 %v1735, %v1737
    %v1739 = vrot.slane %v1711, %v1738
    %v1740 = vcombine.low %v1725, %v1732
    %v1742 = vunpack.c.l.s4 1966171168
    %v1743 = vunpack.c.0.s8 %v1742
    %v1744 = vlaneseq
    %v1745 = vshrl.u32 %v1744, 7
    %v1746 = vsub.s32 %v1743, %v1745
    %v1747 = vrot.slane %v1740, %v1746
    %v1749 = vunpack.c.l.s4 1966171168
    %v1750 = vunpack.c.0.s8 %v1749
    %v1751 = vlaneseq
    %v1752 = vshrl.u32 %v1751, 7
    %v1753 = vsub.s32 %v1750, %v1752
    %v1754 = vrot.slane %v1739, %v1753
    %v1755 = vcombine.low %v1747, %v1754
    %1757 = vst.msk [vmem:[#allocation8] sm:$0x1f] %vm1663, %v1755
    // Predicated region
    $region22: #{tpu_custom_call.1} parent=1 // pred_check
      _
    $region23: #{tpu_custom_call.1} parent=1 // pred_check_branch
      %1759 = sbr.rel (0) target = $region25
    $region24: #{tpu_custom_call.1} parent=1 // pred_region
      %s1761 = ssub.s32 80, 80
      %1762 = vsyncadd [#allocation4], %s1761
      %s1764 = sshll.u32 [#allocation7], 4
      %s1765 = int_to_ptr.vmem [resolvable:$true] %s1764
      %1767 = dma.vmem_to_hbm [thread:$0]  %s1765, 80, %s3, [#allocation4]
    $region25: #{tpu_custom_call.1} parent=1 // pred_fallthru
      _
    // Predicated region
    $region26: #{tpu_custom_call.1} parent=1 // pred_check
      _
    $region27: #{tpu_custom_call.1} parent=1 // pred_check_branch
      %1769 = sbr.rel (0) target = $region29
    $region28: #{tpu_custom_call.1} parent=1 // pred_region
      %s1771 = ssub.s32 80, 80
      %1772 = vsyncadd [#allocation9], %s1771
      %s1774 = sshll.u32 [#allocation8], 4
      %s1775 = int_to_ptr.vmem [resolvable:$true] %s1774
      %1777 = dma.vmem_to_hbm [thread:$0]  %s1775, 80, %s4, [#allocation9]
    $region29: #{tpu_custom_call.1} parent=1 // pred_fallthru
      _
    // Predicated region
    $region30: #{tpu_custom_call.1} parent=1 // pred_check
      _
    $region31: #{tpu_custom_call.1} parent=1 // pred_check_branch
      %1779 = sbr.rel (0) target = $region33
    $region32: #{tpu_custom_call.1} parent=1 // pred_region
      %1780 = dma.done [#allocation4], 80
    $region33: #{tpu_custom_call.1} parent=1 // pred_fallthru
      _
    // Predicated region
    $region34: #{tpu_custom_call.1} parent=1 // pred_check
      _
    $region35: #{tpu_custom_call.1} parent=1 // pred_check_branch
      %1782 = sbr.rel (0) target = $region37
    $region36: #{tpu_custom_call.1} parent=1 // pred_region
      %1783 = dma.done [#allocation9], 80
    $region37: #{tpu_custom_call.1} parent=1 // pred_fallthru
      _
    %1784 = vsyncpa [#allocation3], 1
    %1785 = vsyncpa [#allocation6], 1
    %1786 = vsyncpa [#allocation4], 1
    %1787 = vsyncpa [#allocation9], 1

</llo_original>
